<compile_context>
chip_gen: v5e
topology: v5e:2x2
jax: 0.10.0
libtpu: 0.0.40
codegen_flags: <defaults>
</compile_context>

<pallas_src>
import math

import jax
import jax.numpy as jnp
from jax.experimental import pallas as pl
from jax.experimental.pallas import tpu as pltpu

NUM_HEADS = 4
LN_EPS = 1e-5


# ---------------------------------------------------------------------------
# Kernel
# ---------------------------------------------------------------------------
def _build_kernel(BT, S, E, precise):
    H = NUM_HEADS
    Dh = E // H
    scale = 1.0 / math.sqrt(Dh)
    mm_dtype = jnp.float32 if precise else jnp.bfloat16
    M = BT * S

    def kernel(x_ref, w_in_ref, w_out_ref, b_in_ref, small_ref, o_ref, attn_ref):
        # Flatten batch into the row (sublane) dim once; all projections use (M, E).
        # (Free relayout because S is a multiple of the 8-sublane tile.)
        x = x_ref[...].astype(jnp.float32).reshape(M, E)

        def attention_layer(x2d, li):
            w_in = w_in_ref[li].astype(mm_dtype)        # (E, 3E)
            w_out = w_out_ref[li].astype(mm_dtype)      # (E, E)
            b_in = b_in_ref[li:li + 1, :]               # (1, 3E) f32
            small = small_ref[li]                       # (3, E)  f32
            b_out = small[0:1, :]
            gamma = small[1:2, :]
            beta = small[2:3, :]

            # QKV projection on the whole (BT*S, E) slab (single MXU matmul).
            qkv = jnp.dot(x2d.astype(mm_dtype), w_in,
                          preferred_element_type=jnp.float32) + b_in    # (M, 3E) f32

            q = (qkv[:, :E] * scale).reshape(BT, S, E)   # scale applied once
            k = qkv[:, E:2 * E].reshape(BT, S, E)
            v = qkv[:, 2 * E:].reshape(BT, S, E)

            # Static unroll over heads; each einsum is batched over the batch dim.
            # Head outputs go straight into the (M, E) VMEM scratch (no lane concat).
            for h in range(H):
                sl = slice(h * Dh, (h + 1) * Dh)
                qh = q[:, :, sl].astype(mm_dtype)                       # (BT, S, Dh)
                kh = k[:, :, sl].astype(mm_dtype)
                vh = v[:, :, sl]

                s = jnp.einsum('bqd,bkd->bqk', qh, kh,
                               preferred_element_type=jnp.float32)      # (BT, S, S)
                s = s - jnp.max(s, axis=-1, keepdims=True)
                p = jnp.exp(s)
                # Reciprocal on the EUP slot (approx in the perf path; exact in
                # the strict-parity path so the 1e-4 check is guaranteed).
                p = p * pl.reciprocal(jnp.sum(p, axis=-1, keepdims=True),
                                      approx=not precise)
                head = jnp.einsum('bqk,bkd->bqd',
                                  p.astype(mm_dtype), vh.astype(mm_dtype),
                                  preferred_element_type=jnp.float32)   # (BT, S, Dh)
                attn_ref[:, sl] = head.reshape(M, Dh)

            attn = attn_ref[...]                                        # (M, E) f32

            # Output projection + residual + LayerNorm (f32).
            proj = jnp.dot(attn.astype(mm_dtype), w_out,
                           preferred_element_type=jnp.float32) + b_out
            y = x2d + proj
            mu = jnp.mean(y, axis=-1, keepdims=True)
            var = jnp.mean((y - mu) ** 2, axis=-1, keepdims=True)
            return (y - mu) * jax.lax.rsqrt(var + LN_EPS) * gamma + beta

        y = attention_layer(x, 0)
        y = attention_layer(y, 1)
        o_ref[...] = y.reshape(BT, S, E).astype(o_ref.dtype)

    return kernel


# ---------------------------------------------------------------------------
# Tiling / VMEM heuristics
# ---------------------------------------------------------------------------
def _choose_batch_tile(B, S, max_rows=1024, min_grid_steps=2):
    """Largest divisor of B whose tile keeps BT*S rows within the VMEM row budget,
    preferring tiles that leave >= min_grid_steps grid steps (megacore on v7x).

    max_rows=1024 is conservative enough for v7x's 64 MiB VMEM at moderate E;
    raise to 2048-4096 on v5e/v6e for big batches."""
    divs = [d for d in range(1, B + 1) if B % d == 0 and d * S <= max_rows]
    if not divs:
        return 1
    pref = [d for d in divs if B // d >= min_grid_steps]
    return max(pref) if pref else max(divs)


def _vmem_limit_bytes(BT, S, E):
    """Rough per-step VMEM need; only raise the scoped limit when it exceeds the
    default (~32 MiB scoped on v6e/v7x), capped below v7x's 64 MiB physical."""
    M = BT * S
    tile = M * E * 4
    # live f32 temporaries: x, qkv(3E), q/k/v, scratch, y/proj, per-head scores
    act = M * (12 * E + 2 * S * NUM_HEADS) * 4
    weights = 2 * (E * 3 * E + E * E + 3 * E + 3 * E) * 4
    need = 4 * tile + act + 2 * weights + (4 << 20)   # 4x tile: double-buffered in/out
    if need <= (32 << 20):
        return None
    return min(need, 56 << 20)


# ---------------------------------------------------------------------------
# Wrapper
# ---------------------------------------------------------------------------
def multihead_attention_block(x, packed, *, precise=True, batch_tile=None,
                              max_rows=1024):
    """x: (B, S, E) float32. packed: dict from pack_params().

    precise=True  -> f32 MXU operands + exact reciprocal (default; best on v5e).
    precise=False -> bf16 MXU operands + approx reciprocal (v6e/v7x at large shapes)."""
    B, S, E = x.shape
    assert E % NUM_HEADS == 0
    # S multiple of 8 keeps the (M,E)<->(BT,S,E) reshapes free (sublane-aligned).

    w_in_t, w_out_t = packed["w_in_t"], packed["w_out_t"]
    b_in, small = packed["b_in"], packed["small"]
    if not precise:  # ship matmul weights as bf16 (halves weight DMA bytes)
        w_in_t = w_in_t.astype(jnp.bfloat16)
        w_out_t = w_out_t.astype(jnp.bfloat16)

    BT = batch_tile if batch_tile is not None else _choose_batch_tile(B, S, max_rows)
    assert B % BT == 0
    grid = (B // BT,)

    kernel = _build_kernel(BT, S, E, precise)
    vmem_limit = _vmem_limit_bytes(BT, S, E)

    # NOTE: if the grid gets long with small per-step compute, consider
    # pipeline_mode=pl.Buffered(3) on the x in_spec; at current tile sizes the
    # bigger tile is the better lever so we keep default double-buffering.
    return pl.pallas_call(
        kernel,
        out_shape=jax.ShapeDtypeStruct((B, S, E), x.dtype),
        grid_spec=pltpu.PrefetchScalarGridSpec(
            num_scalar_prefetch=0,
            grid=grid,
            in_specs=[
                pl.BlockSpec((BT, S, E), lambda i: (i, 0, 0)),       # x batch tile
                pl.BlockSpec(w_in_t.shape, lambda i: (0, 0, 0)),     # (2, E, 3E)
                pl.BlockSpec(w_out_t.shape, lambda i: (0, 0, 0)),    # (2, E, E)
                pl.BlockSpec(b_in.shape, lambda i: (0, 0)),          # (2, 3E)
                pl.BlockSpec(small.shape, lambda i: (0, 0, 0)),      # (2, 3, E)
            ],
            out_specs=pl.BlockSpec((BT, S, E), lambda i: (i, 0, 0)),
            scratch_shapes=[pltpu.VMEM((BT * S, E), jnp.float32)],   # head outputs
        ),
        compiler_params=pltpu.CompilerParams(
            dimension_semantics=("parallel",),
            vmem_limit_bytes=vmem_limit,
        ),
    )(x, w_in_t, w_out_t, b_in, small)


# ---------------------------------------------------------------------------
# Parameters (PyTorch-shaped raw weights + packed slabs for the kernel)
# ---------------------------------------------------------------------------
def init_params(key, E):
    ks = jax.random.split(key, 8)
    s = 1.0 / math.sqrt(E)

    def mk(k, shape):
        return jax.random.uniform(k, shape, jnp.float32, minval=-s, maxval=s)

    # nn.MultiheadAttention: in_proj_weight (3E,E), in_proj_bias (3E,),
    # out_proj.weight (E,E), out_proj.bias (E,). LayerNorm: weight/bias (E,).
    return {
        "in_w1": mk(ks[0], (3 * E, E)), "in_b1": mk(ks[1], (3 * E,)),
        "out_w1": mk(ks[2], (E, E)),    "out_b1": mk(ks[3], (E,)),
        "ln1_g": jnp.ones((E,), jnp.float32), "ln1_b": jnp.zeros((E,), jnp.float32),
        "in_w2": mk(ks[4], (3 * E, E)), "in_b2": mk(ks[5], (3 * E,)),
        "out_w2": mk(ks[6], (E, E)),    "out_b2": mk(ks[7], (E,)),
        "ln2_g": jnp.ones((E,), jnp.float32), "ln2_b": jnp.zeros((E,), jnp.float32),
    }


def pack_params(raw):
    """Pack the 12 tensors into 4 slabs (pre-transposed so kernel does x @ W_t)."""
    w_in_t = jnp.stack([raw["in_w1"].T, raw["in_w2"].T])        # (2, E, 3E)
    w_out_t = jnp.stack([raw["out_w1"].T, raw["out_w2"].T])     # (2, E, E)
    b_in = jnp.stack([raw["in_b1"], raw["in_b2"]])              # (2, 3E)
    small = jnp.stack([
        jnp.stack([raw["out_b1"], raw["ln1_g"], raw["ln1_b"]]),
        jnp.stack([raw["out_b2"], raw["ln2_g"], raw["ln2_b"]]),
    ])                                                          # (2, 3, E)
    return {"w_in_t": w_in_t, "w_out_t": w_out_t, "b_in": b_in, "small": small}


# ---------------------------------------------------------------------------
# Pure-JAX reference mirroring the PyTorch forward
# ---------------------------------------------------------------------------
def reference_jax(x, raw):
    H = NUM_HEADS

    def mha(x, in_w, in_b, out_w, out_b):
        B, S, E = x.shape
        Dh = E // H
        qkv = x @ in_w.T + in_b
        q, k, v = qkv[..., :E], qkv[..., E:2 * E], qkv[..., 2 * E:]
        q = q.reshape(B, S, H, Dh).transpose(0, 2, 1, 3) / math.sqrt(Dh)
        k = k.reshape(B, S, H, Dh).transpose(0, 2, 1, 3)
        v = v.reshape(B, S, H, Dh).transpose(0, 2, 1, 3)
        a = jax.nn.softmax(jnp.einsum("bhqd,bhkd->bhqk", q, k), axis=-1)
        o = jnp.einsum("bhqk,bhkd->bhqd", a, v).transpose(0, 2, 1, 3).reshape(B, S, E)
        return o @ out_w.T + out_b

    def ln(x, g, b):
        mu = x.mean(-1, keepdims=True)
        var = ((x - mu) ** 2).mean(-1, keepdims=True)
        return (x - mu) * jax.lax.rsqrt(var + LN_EPS) * g + b

    x1 = ln(x + mha(x, raw["in_w1"], raw["in_b1"], raw["out_w1"], raw["out_b1"]),
            raw["ln1_g"], raw["ln1_b"])
    x2 = ln(x1 + mha(x1, raw["in_w2"], raw["in_b2"], raw["out_w2"], raw["out_b2"]),
            raw["ln2_g"], raw["ln2_b"])
    return x2


if __name__ == "__main__":
    # Small shapes consistent with the module (embed dim must divide num_heads=4).
    B, S, E = 2, 8, 32

    key = jax.random.PRNGKey(0)
    kx, kp = jax.random.split(key)
    x = jax.random.normal(kx, (B, S, E), jnp.float32)
    raw = init_params(kp, E)
    packed = pack_params(raw)
    ref = reference_jax(x, raw)

    # Strict-parity path (f32 matmuls, exact reciprocal) vs. the PyTorch-style reference.
    out = jax.block_until_ready(multihead_attention_block(x, packed, precise=True))
    assert out.shape == (B, S, E)
    assert jnp.allclose(out, ref, atol=1e-4, rtol=1e-4)

    # Perf path (bf16 MXU operands + approx reciprocal) -- loose sanity check only.
    out_fast = jax.block_until_ready(multihead_attention_block(x, packed, precise=False))
    assert jnp.allclose(out_fast, ref, atol=1e-1, rtol=1e-1)

    print("KERNEL_OK")
</pallas_src>

<mosaic_0001>
module attributes {stable_mosaic.version = 11 : i64} {
  func.func @kernel(%arg0: i32, %arg1: memref<1x8x32xf32, #tpu.memory_space<vmem>>, %arg2: memref<2x32x96xf32, #tpu.memory_space<vmem>>, %arg3: memref<2x32x32xf32, #tpu.memory_space<vmem>>, %arg4: memref<2x96xf32, #tpu.memory_space<vmem>>, %arg5: memref<2x3x32xf32, #tpu.memory_space<vmem>>, %arg6: memref<1x8x32xf32, #tpu.memory_space<vmem>>, %arg7: memref<8x32xf32, #tpu.memory_space<vmem>>) attributes {dimension_semantics = [#tpu.dimension_semantics<parallel>], iteration_bounds = array<i64: 2>, scalar_prefetch = 0 : i64, scratch_operands = 1 : i64, tpu.core_type = #tpu.core_type<tc>, window_params = [{transform_indices = @transform_0, window_bounds = array<i64: 1, 8, 32>}, {pipeline_mode = #tpu.pipeline_mode<synchronous>, transform_indices = @transform_1, window_bounds = array<i64: 2, 32, 96>}, {pipeline_mode = #tpu.pipeline_mode<synchronous>, transform_indices = @transform_2, window_bounds = array<i64: 2, 32, 32>}, {pipeline_mode = #tpu.pipeline_mode<synchronous>, transform_indices = @transform_3, window_bounds = array<i64: 2, 96>}, {pipeline_mode = #tpu.pipeline_mode<synchronous>, transform_indices = @transform_4, window_bounds = array<i64: 2, 3, 32>}, {transform_indices = @transform_5, window_bounds = array<i64: 1, 8, 32>}]} {
    %c0 = arith.constant 0 : index
    %c0_0 = arith.constant 0 : index
    %c0_1 = arith.constant 0 : index
    %0 = vector.load %arg1[%c0, %c0_0, %c0_1] : memref<1x8x32xf32, #tpu.memory_space<vmem>>, vector<1x8x32xf32>
    %1 = vector.shape_cast %0 : vector<1x8x32xf32> to vector<8x32xf32>
    %c0_2 = arith.constant 0 : index
    %c0_3 = arith.constant 0 : index
    %c0_4 = arith.constant 0 : index
    %2 = vector.load %arg2[%c0_2, %c0_3, %c0_4] : memref<2x32x96xf32, #tpu.memory_space<vmem>>, vector<1x32x96xf32>
    %3 = vector.shape_cast %2 : vector<1x32x96xf32> to vector<32x96xf32>
    %c0_5 = arith.constant 0 : index
    %c0_6 = arith.constant 0 : index
    %c0_7 = arith.constant 0 : index
    %4 = vector.load %arg3[%c0_5, %c0_6, %c0_7] : memref<2x32x32xf32, #tpu.memory_space<vmem>>, vector<1x32x32xf32>
    %5 = vector.shape_cast %4 : vector<1x32x32xf32> to vector<32x32xf32>
    %c0_8 = arith.constant 0 : index
    %c0_9 = arith.constant 0 : index
    %6 = vector.load %arg4[%c0_8, %c0_9] : memref<2x96xf32, #tpu.memory_space<vmem>>, vector<1x96xf32>
    %c0_10 = arith.constant 0 : index
    %c0_11 = arith.constant 0 : index
    %c0_12 = arith.constant 0 : index
    %7 = vector.load %arg5[%c0_10, %c0_11, %c0_12] : memref<2x3x32xf32, #tpu.memory_space<vmem>>, vector<1x3x32xf32>
    %8 = vector.shape_cast %7 : vector<1x3x32xf32> to vector<3x32xf32>
    %9 = vector.extract_strided_slice %8 {offsets = [0, 0], sizes = [1, 32], strides = [1, 1]} : vector<3x32xf32> to vector<1x32xf32>
    %10 = vector.extract_strided_slice %8 {offsets = [1, 0], sizes = [1, 32], strides = [1, 1]} : vector<3x32xf32> to vector<1x32xf32>
    %11 = vector.extract_strided_slice %8 {offsets = [2, 0], sizes = [1, 32], strides = [1, 1]} : vector<3x32xf32> to vector<1x32xf32>
    %cst = arith.constant dense<0.000000e+00> : vector<8x96xf32>
    %12 = tpu.matmul %1, %3, %cst {dimension_numbers = #tpu.dot_dimension_numbers<[1], [0], [0], [1], [0, 0, 1, 1], [], []>} : vector<8x32xf32>, vector<32x96xf32>, vector<8x96xf32> -> vector<8x96xf32>
    %13 = vector.broadcast %6 : vector<1x96xf32> to vector<8x96xf32>
    %14 = arith.addf %12, %13 : vector<8x96xf32>
    %15 = vector.extract_strided_slice %14 {offsets = [0, 0], sizes = [8, 32], strides = [1, 1]} : vector<8x96xf32> to vector<8x32xf32>
    %cst_13 = arith.constant 0.353553385 : f32
    %16 = vector.broadcast %cst_13 : f32 to vector<8x32xf32>
    %17 = arith.mulf %15, %16 : vector<8x32xf32>
    %18 = vector.shape_cast %17 : vector<8x32xf32> to vector<1x8x32xf32>
    %19 = vector.extract_strided_slice %14 {offsets = [0, 32], sizes = [8, 32], strides = [1, 1]} : vector<8x96xf32> to vector<8x32xf32>
    %20 = vector.shape_cast %19 : vector<8x32xf32> to vector<1x8x32xf32>
    %21 = vector.extract_strided_slice %14 {offsets = [0, 64], sizes = [8, 32], strides = [1, 1]} : vector<8x96xf32> to vector<8x32xf32>
    %22 = vector.shape_cast %21 : vector<8x32xf32> to vector<1x8x32xf32>
    %23 = vector.extract_strided_slice %18 {offsets = [0, 0, 0], sizes = [1, 8, 8], strides = [1, 1, 1]} : vector<1x8x32xf32> to vector<1x8x8xf32>
    %24 = vector.extract_strided_slice %20 {offsets = [0, 0, 0], sizes = [1, 8, 8], strides = [1, 1, 1]} : vector<1x8x32xf32> to vector<1x8x8xf32>
    %25 = vector.extract_strided_slice %22 {offsets = [0, 0, 0], sizes = [1, 8, 8], strides = [1, 1, 1]} : vector<1x8x32xf32> to vector<1x8x8xf32>
    "tpu.trace_start"() <{level = 10 : i32, message = "bqd,bkd->bqk"}> : () -> ()
    %cst_14 = arith.constant dense<0.000000e+00> : vector<1x8x8xf32>
    %26 = tpu.matmul %23, %24, %cst_14 {dimension_numbers = #tpu.dot_dimension_numbers<[2], [2], [1], [1], [0, 0, 0, 1, 1, 1], [0], [0]>} : vector<1x8x8xf32>, vector<1x8x8xf32>, vector<1x8x8xf32> -> vector<1x8x8xf32>
    "tpu.trace_stop"() : () -> ()
    %cst_15 = arith.constant dense<0xFF800000> : vector<1x8xf32>
    %27 = vector.multi_reduction <maximumf>, %26, %cst_15 [2] : vector<1x8x8xf32> to vector<1x8xf32>
    %28 = vector.shape_cast %27 : vector<1x8xf32> to vector<1x8x1xf32>
    %29 = vector.broadcast %28 : vector<1x8x1xf32> to vector<1x8x8xf32>
    %30 = arith.subf %26, %29 : vector<1x8x8xf32>
    %31 = math.exp %30 : vector<1x8x8xf32>
    %cst_16 = arith.constant dense<0.000000e+00> : vector<1x8xf32>
    %32 = vector.multi_reduction <add>, %31, %cst_16 [2] : vector<1x8x8xf32> to vector<1x8xf32>
    %33 = vector.shape_cast %32 : vector<1x8xf32> to vector<1x8x1xf32>
    %34 = tpu.reciprocal %33 : vector<1x8x1xf32> -> vector<1x8x1xf32>
    %35 = vector.broadcast %34 : vector<1x8x1xf32> to vector<1x8x8xf32>
    %36 = arith.mulf %31, %35 : vector<1x8x8xf32>
    "tpu.trace_start"() <{level = 10 : i32, message = "bqk,bkd->bqd"}> : () -> ()
    %cst_17 = arith.constant dense<0.000000e+00> : vector<1x8x8xf32>
    %37 = tpu.matmul %36, %25, %cst_17 {dimension_numbers = #tpu.dot_dimension_numbers<[2], [1], [1], [2], [0, 0, 0, 1, 1, 2], [0], [0]>} : vector<1x8x8xf32>, vector<1x8x8xf32>, vector<1x8x8xf32> -> vector<1x8x8xf32>
    "tpu.trace_stop"() : () -> ()
    %38 = vector.shape_cast %37 : vector<1x8x8xf32> to vector<8x8xf32>
    %c0_18 = arith.constant 0 : index
    %c0_19 = arith.constant 0 : index
    %39 = vector.load %arg7[%c0_18, %c0_19] : memref<8x32xf32, #tpu.memory_space<vmem>>, vector<8x8xf32>
    tpu.vector_store %arg7[%c0_18, %c0_19], %38 {strides = array<i32>} : memref<8x32xf32, #tpu.memory_space<vmem>>, vector<8x8xf32>,
    %40 = vector.extract_strided_slice %18 {offsets = [0, 0, 8], sizes = [1, 8, 8], strides = [1, 1, 1]} : vector<1x8x32xf32> to vector<1x8x8xf32>
    %41 = vector.extract_strided_slice %20 {offsets = [0, 0, 8], sizes = [1, 8, 8], strides = [1, 1, 1]} : vector<1x8x32xf32> to vector<1x8x8xf32>
    %42 = vector.extract_strided_slice %22 {offsets = [0, 0, 8], sizes = [1, 8, 8], strides = [1, 1, 1]} : vector<1x8x32xf32> to vector<1x8x8xf32>
    "tpu.trace_start"() <{level = 10 : i32, message = "bqd,bkd->bqk"}> : () -> ()
    %cst_20 = arith.constant dense<0.000000e+00> : vector<1x8x8xf32>
    %43 = tpu.matmul %40, %41, %cst_20 {dimension_numbers = #tpu.dot_dimension_numbers<[2], [2], [1], [1], [0, 0, 0, 1, 1, 1], [0], [0]>} : vector<1x8x8xf32>, vector<1x8x8xf32>, vector<1x8x8xf32> -> vector<1x8x8xf32>
    "tpu.trace_stop"() : () -> ()
    %cst_21 = arith.constant dense<0xFF800000> : vector<1x8xf32>
    %44 = vector.multi_reduction <maximumf>, %43, %cst_21 [2] : vector<1x8x8xf32> to vector<1x8xf32>
    %45 = vector.shape_cast %44 : vector<1x8xf32> to vector<1x8x1xf32>
    %46 = vector.broadcast %45 : vector<1x8x1xf32> to vector<1x8x8xf32>
    %47 = arith.subf %43, %46 : vector<1x8x8xf32>
    %48 = math.exp %47 : vector<1x8x8xf32>
    %cst_22 = arith.constant dense<0.000000e+00> : vector<1x8xf32>
    %49 = vector.multi_reduction <add>, %48, %cst_22 [2] : vector<1x8x8xf32> to vector<1x8xf32>
    %50 = vector.shape_cast %49 : vector<1x8xf32> to vector<1x8x1xf32>
    %51 = tpu.reciprocal %50 : vector<1x8x1xf32> -> vector<1x8x1xf32>
    %52 = vector.broadcast %51 : vector<1x8x1xf32> to vector<1x8x8xf32>
    %53 = arith.mulf %48, %52 : vector<1x8x8xf32>
    "tpu.trace_start"() <{level = 10 : i32, message = "bqk,bkd->bqd"}> : () -> ()
    %cst_23 = arith.constant dense<0.000000e+00> : vector<1x8x8xf32>
    %54 = tpu.matmul %53, %42, %cst_23 {dimension_numbers = #tpu.dot_dimension_numbers<[2], [1], [1], [2], [0, 0, 0, 1, 1, 2], [0], [0]>} : vector<1x8x8xf32>, vector<1x8x8xf32>, vector<1x8x8xf32> -> vector<1x8x8xf32>
    "tpu.trace_stop"() : () -> ()
    %55 = vector.shape_cast %54 : vector<1x8x8xf32> to vector<8x8xf32>
    %c0_24 = arith.constant 0 : index
    %c8 = arith.constant 8 : index
    %56 = vector.load %arg7[%c0_24, %c8] : memref<8x32xf32, #tpu.memory_space<vmem>>, vector<8x8xf32>
    tpu.vector_store %arg7[%c0_24, %c8], %55 {strides = array<i32>} : memref<8x32xf32, #tpu.memory_space<vmem>>, vector<8x8xf32>,
    %57 = vector.extract_strided_slice %18 {offsets = [0, 0, 16], sizes = [1, 8, 8], strides = [1, 1, 1]} : vector<1x8x32xf32> to vector<1x8x8xf32>
    %58 = vector.extract_strided_slice %20 {offsets = [0, 0, 16], sizes = [1, 8, 8], strides = [1, 1, 1]} : vector<1x8x32xf32> to vector<1x8x8xf32>
    %59 = vector.extract_strided_slice %22 {offsets = [0, 0, 16], sizes = [1, 8, 8], strides = [1, 1, 1]} : vector<1x8x32xf32> to vector<1x8x8xf32>
    "tpu.trace_start"() <{level = 10 : i32, message = "bqd,bkd->bqk"}> : () -> ()
    %cst_25 = arith.constant dense<0.000000e+00> : vector<1x8x8xf32>
    %60 = tpu.matmul %57, %58, %cst_25 {dimension_numbers = #tpu.dot_dimension_numbers<[2], [2], [1], [1], [0, 0, 0, 1, 1, 1], [0], [0]>} : vector<1x8x8xf32>, vector<1x8x8xf32>, vector<1x8x8xf32> -> vector<1x8x8xf32>
    "tpu.trace_stop"() : () -> ()
    %cst_26 = arith.constant dense<0xFF800000> : vector<1x8xf32>
    %61 = vector.multi_reduction <maximumf>, %60, %cst_26 [2] : vector<1x8x8xf32> to vector<1x8xf32>
    %62 = vector.shape_cast %61 : vector<1x8xf32> to vector<1x8x1xf32>
    %63 = vector.broadcast %62 : vector<1x8x1xf32> to vector<1x8x8xf32>
    %64 = arith.subf %60, %63 : vector<1x8x8xf32>
    %65 = math.exp %64 : vector<1x8x8xf32>
    %cst_27 = arith.constant dense<0.000000e+00> : vector<1x8xf32>
    %66 = vector.multi_reduction <add>, %65, %cst_27 [2] : vector<1x8x8xf32> to vector<1x8xf32>
    %67 = vector.shape_cast %66 : vector<1x8xf32> to vector<1x8x1xf32>
    %68 = tpu.reciprocal %67 : vector<1x8x1xf32> -> vector<1x8x1xf32>
    %69 = vector.broadcast %68 : vector<1x8x1xf32> to vector<1x8x8xf32>
    %70 = arith.mulf %65, %69 : vector<1x8x8xf32>
    "tpu.trace_start"() <{level = 10 : i32, message = "bqk,bkd->bqd"}> : () -> ()
    %cst_28 = arith.constant dense<0.000000e+00> : vector<1x8x8xf32>
    %71 = tpu.matmul %70, %59, %cst_28 {dimension_numbers = #tpu.dot_dimension_numbers<[2], [1], [1], [2], [0, 0, 0, 1, 1, 2], [0], [0]>} : vector<1x8x8xf32>, vector<1x8x8xf32>, vector<1x8x8xf32> -> vector<1x8x8xf32>
    "tpu.trace_stop"() : () -> ()
    %72 = vector.shape_cast %71 : vector<1x8x8xf32> to vector<8x8xf32>
    %c0_29 = arith.constant 0 : index
    %c16 = arith.constant 16 : index
    %73 = vector.load %arg7[%c0_29, %c16] : memref<8x32xf32, #tpu.memory_space<vmem>>, vector<8x8xf32>
    tpu.vector_store %arg7[%c0_29, %c16], %72 {strides = array<i32>} : memref<8x32xf32, #tpu.memory_space<vmem>>, vector<8x8xf32>,
    %74 = vector.extract_strided_slice %18 {offsets = [0, 0, 24], sizes = [1, 8, 8], strides = [1, 1, 1]} : vector<1x8x32xf32> to vector<1x8x8xf32>
    %75 = vector.extract_strided_slice %20 {offsets = [0, 0, 24], sizes = [1, 8, 8], strides = [1, 1, 1]} : vector<1x8x32xf32> to vector<1x8x8xf32>
    %76 = vector.extract_strided_slice %22 {offsets = [0, 0, 24], sizes = [1, 8, 8], strides = [1, 1, 1]} : vector<1x8x32xf32> to vector<1x8x8xf32>
    "tpu.trace_start"() <{level = 10 : i32, message = "bqd,bkd->bqk"}> : () -> ()
    %cst_30 = arith.constant dense<0.000000e+00> : vector<1x8x8xf32>
    %77 = tpu.matmul %74, %75, %cst_30 {dimension_numbers = #tpu.dot_dimension_numbers<[2], [2], [1], [1], [0, 0, 0, 1, 1, 1], [0], [0]>} : vector<1x8x8xf32>, vector<1x8x8xf32>, vector<1x8x8xf32> -> vector<1x8x8xf32>
    "tpu.trace_stop"() : () -> ()
    %cst_31 = arith.constant dense<0xFF800000> : vector<1x8xf32>
    %78 = vector.multi_reduction <maximumf>, %77, %cst_31 [2] : vector<1x8x8xf32> to vector<1x8xf32>
    %79 = vector.shape_cast %78 : vector<1x8xf32> to vector<1x8x1xf32>
    %80 = vector.broadcast %79 : vector<1x8x1xf32> to vector<1x8x8xf32>
    %81 = arith.subf %77, %80 : vector<1x8x8xf32>
    %82 = math.exp %81 : vector<1x8x8xf32>
    %cst_32 = arith.constant dense<0.000000e+00> : vector<1x8xf32>
    %83 = vector.multi_reduction <add>, %82, %cst_32 [2] : vector<1x8x8xf32> to vector<1x8xf32>
    %84 = vector.shape_cast %83 : vector<1x8xf32> to vector<1x8x1xf32>
    %85 = tpu.reciprocal %84 : vector<1x8x1xf32> -> vector<1x8x1xf32>
    %86 = vector.broadcast %85 : vector<1x8x1xf32> to vector<1x8x8xf32>
    %87 = arith.mulf %82, %86 : vector<1x8x8xf32>
    "tpu.trace_start"() <{level = 10 : i32, message = "bqk,bkd->bqd"}> : () -> ()
    %cst_33 = arith.constant dense<0.000000e+00> : vector<1x8x8xf32>
    %88 = tpu.matmul %87, %76, %cst_33 {dimension_numbers = #tpu.dot_dimension_numbers<[2], [1], [1], [2], [0, 0, 0, 1, 1, 2], [0], [0]>} : vector<1x8x8xf32>, vector<1x8x8xf32>, vector<1x8x8xf32> -> vector<1x8x8xf32>
    "tpu.trace_stop"() : () -> ()
    %89 = vector.shape_cast %88 : vector<1x8x8xf32> to vector<8x8xf32>
    %c0_34 = arith.constant 0 : index
    %c24 = arith.constant 24 : index
    %90 = vector.load %arg7[%c0_34, %c24] : memref<8x32xf32, #tpu.memory_space<vmem>>, vector<8x8xf32>
    tpu.vector_store %arg7[%c0_34, %c24], %89 {strides = array<i32>} : memref<8x32xf32, #tpu.memory_space<vmem>>, vector<8x8xf32>,
    %c0_35 = arith.constant 0 : index
    %c0_36 = arith.constant 0 : index
    %91 = vector.load %arg7[%c0_35, %c0_36] : memref<8x32xf32, #tpu.memory_space<vmem>>, vector<8x32xf32>
    %cst_37 = arith.constant dense<0.000000e+00> : vector<8x32xf32>
    %92 = tpu.matmul %91, %5, %cst_37 {dimension_numbers = #tpu.dot_dimension_numbers<[1], [0], [0], [1], [0, 0, 1, 1], [], []>} : vector<8x32xf32>, vector<32x32xf32>, vector<8x32xf32> -> vector<8x32xf32>
    %93 = vector.broadcast %9 : vector<1x32xf32> to vector<8x32xf32>
    %94 = arith.addf %92, %93 : vector<8x32xf32>
    %95 = arith.addf %1, %94 : vector<8x32xf32>
    %cst_38 = arith.constant dense<0.000000e+00> : vector<8xf32>
    %96 = vector.multi_reduction <add>, %95, %cst_38 [1] : vector<8x32xf32> to vector<8xf32>
    %97 = vector.shape_cast %96 : vector<8xf32> to vector<8x1xf32>
    %cst_39 = arith.constant 3.200000e+01 : f32
    %98 = vector.broadcast %cst_39 : f32 to vector<8x1xf32>
    %99 = arith.divf %97, %98 : vector<8x1xf32>
    %100 = vector.broadcast %99 : vector<8x1xf32> to vector<8x32xf32>
    %101 = arith.subf %95, %100 : vector<8x32xf32>
    %102 = arith.mulf %101, %101 : vector<8x32xf32>
    %cst_40 = arith.constant dense<0.000000e+00> : vector<8xf32>
    %103 = vector.multi_reduction <add>, %102, %cst_40 [1] : vector<8x32xf32> to vector<8xf32>
    %104 = vector.shape_cast %103 : vector<8xf32> to vector<8x1xf32>
    %cst_41 = arith.constant 3.200000e+01 : f32
    %105 = vector.broadcast %cst_41 : f32 to vector<8x1xf32>
    %106 = arith.divf %104, %105 : vector<8x1xf32>
    %107 = vector.broadcast %99 : vector<8x1xf32> to vector<8x32xf32>
    %108 = arith.subf %95, %107 : vector<8x32xf32>
    %cst_42 = arith.constant 9.99999974E-6 : f32
    %109 = vector.broadcast %cst_42 : f32 to vector<8x1xf32>
    %110 = arith.addf %106, %109 : vector<8x1xf32>
    %111 = math.rsqrt %110 : vector<8x1xf32>
    %112 = vector.broadcast %111 : vector<8x1xf32> to vector<8x32xf32>
    %113 = arith.mulf %108, %112 : vector<8x32xf32>
    %114 = vector.broadcast %10 : vector<1x32xf32> to vector<8x32xf32>
    %115 = arith.mulf %113, %114 : vector<8x32xf32>
    %116 = vector.broadcast %11 : vector<1x32xf32> to vector<8x32xf32>
    %117 = arith.addf %115, %116 : vector<8x32xf32>
    %c1 = arith.constant 1 : index
    %c0_43 = arith.constant 0 : index
    %c0_44 = arith.constant 0 : index
    %118 = vector.load %arg2[%c1, %c0_43, %c0_44] : memref<2x32x96xf32, #tpu.memory_space<vmem>>, vector<1x32x96xf32>
    %119 = vector.shape_cast %118 : vector<1x32x96xf32> to vector<32x96xf32>
    %c1_45 = arith.constant 1 : index
    %c0_46 = arith.constant 0 : index
    %c0_47 = arith.constant 0 : index
    %120 = vector.load %arg3[%c1_45, %c0_46, %c0_47] : memref<2x32x32xf32, #tpu.memory_space<vmem>>, vector<1x32x32xf32>
    %121 = vector.shape_cast %120 : vector<1x32x32xf32> to vector<32x32xf32>
    %c1_48 = arith.constant 1 : index
    %c0_49 = arith.constant 0 : index
    %122 = vector.load %arg4[%c1_48, %c0_49] : memref<2x96xf32, #tpu.memory_space<vmem>>, vector<1x96xf32>
    %c1_50 = arith.constant 1 : index
    %c0_51 = arith.constant 0 : index
    %c0_52 = arith.constant 0 : index
    %123 = vector.load %arg5[%c1_50, %c0_51, %c0_52] : memref<2x3x32xf32, #tpu.memory_space<vmem>>, vector<1x3x32xf32>
    %124 = vector.shape_cast %123 : vector<1x3x32xf32> to vector<3x32xf32>
    %125 = vector.extract_strided_slice %124 {offsets = [0, 0], sizes = [1, 32], strides = [1, 1]} : vector<3x32xf32> to vector<1x32xf32>
    %126 = vector.extract_strided_slice %124 {offsets = [1, 0], sizes = [1, 32], strides = [1, 1]} : vector<3x32xf32> to vector<1x32xf32>
    %127 = vector.extract_strided_slice %124 {offsets = [2, 0], sizes = [1, 32], strides = [1, 1]} : vector<3x32xf32> to vector<1x32xf32>
    %cst_53 = arith.constant dense<0.000000e+00> : vector<8x96xf32>
    %128 = tpu.matmul %117, %119, %cst_53 {dimension_numbers = #tpu.dot_dimension_numbers<[1], [0], [0], [1], [0, 0, 1, 1], [], []>} : vector<8x32xf32>, vector<32x96xf32>, vector<8x96xf32> -> vector<8x96xf32>
    %129 = vector.broadcast %122 : vector<1x96xf32> to vector<8x96xf32>
    %130 = arith.addf %128, %129 : vector<8x96xf32>
    %131 = vector.extract_strided_slice %130 {offsets = [0, 0], sizes = [8, 32], strides = [1, 1]} : vector<8x96xf32> to vector<8x32xf32>
    %cst_54 = arith.constant 0.353553385 : f32
    %132 = vector.broadcast %cst_54 : f32 to vector<8x32xf32>
    %133 = arith.mulf %131, %132 : vector<8x32xf32>
    %134 = vector.shape_cast %133 : vector<8x32xf32> to vector<1x8x32xf32>
    %135 = vector.extract_strided_slice %130 {offsets = [0, 32], sizes = [8, 32], strides = [1, 1]} : vector<8x96xf32> to vector<8x32xf32>
    %136 = vector.shape_cast %135 : vector<8x32xf32> to vector<1x8x32xf32>
    %137 = vector.extract_strided_slice %130 {offsets = [0, 64], sizes = [8, 32], strides = [1, 1]} : vector<8x96xf32> to vector<8x32xf32>
    %138 = vector.shape_cast %137 : vector<8x32xf32> to vector<1x8x32xf32>
    %139 = vector.extract_strided_slice %134 {offsets = [0, 0, 0], sizes = [1, 8, 8], strides = [1, 1, 1]} : vector<1x8x32xf32> to vector<1x8x8xf32>
    %140 = vector.extract_strided_slice %136 {offsets = [0, 0, 0], sizes = [1, 8, 8], strides = [1, 1, 1]} : vector<1x8x32xf32> to vector<1x8x8xf32>
    %141 = vector.extract_strided_slice %138 {offsets = [0, 0, 0], sizes = [1, 8, 8], strides = [1, 1, 1]} : vector<1x8x32xf32> to vector<1x8x8xf32>
    "tpu.trace_start"() <{level = 10 : i32, message = "bqd,bkd->bqk"}> : () -> ()
    %cst_55 = arith.constant dense<0.000000e+00> : vector<1x8x8xf32>
    %142 = tpu.matmul %139, %140, %cst_55 {dimension_numbers = #tpu.dot_dimension_numbers<[2], [2], [1], [1], [0, 0, 0, 1, 1, 1], [0], [0]>} : vector<1x8x8xf32>, vector<1x8x8xf32>, vector<1x8x8xf32> -> vector<1x8x8xf32>
    "tpu.trace_stop"() : () -> ()
    %cst_56 = arith.constant dense<0xFF800000> : vector<1x8xf32>
    %143 = vector.multi_reduction <maximumf>, %142, %cst_56 [2] : vector<1x8x8xf32> to vector<1x8xf32>
    %144 = vector.shape_cast %143 : vector<1x8xf32> to vector<1x8x1xf32>
    %145 = vector.broadcast %144 : vector<1x8x1xf32> to vector<1x8x8xf32>
    %146 = arith.subf %142, %145 : vector<1x8x8xf32>
    %147 = math.exp %146 : vector<1x8x8xf32>
    %cst_57 = arith.constant dense<0.000000e+00> : vector<1x8xf32>
    %148 = vector.multi_reduction <add>, %147, %cst_57 [2] : vector<1x8x8xf32> to vector<1x8xf32>
    %149 = vector.shape_cast %148 : vector<1x8xf32> to vector<1x8x1xf32>
    %150 = tpu.reciprocal %149 : vector<1x8x1xf32> -> vector<1x8x1xf32>
    %151 = vector.broadcast %150 : vector<1x8x1xf32> to vector<1x8x8xf32>
    %152 = arith.mulf %147, %151 : vector<1x8x8xf32>
    "tpu.trace_start"() <{level = 10 : i32, message = "bqk,bkd->bqd"}> : () -> ()
    %cst_58 = arith.constant dense<0.000000e+00> : vector<1x8x8xf32>
    %153 = tpu.matmul %152, %141, %cst_58 {dimension_numbers = #tpu.dot_dimension_numbers<[2], [1], [1], [2], [0, 0, 0, 1, 1, 2], [0], [0]>} : vector<1x8x8xf32>, vector<1x8x8xf32>, vector<1x8x8xf32> -> vector<1x8x8xf32>
    "tpu.trace_stop"() : () -> ()
    %154 = vector.shape_cast %153 : vector<1x8x8xf32> to vector<8x8xf32>
    %c0_59 = arith.constant 0 : index
    %c0_60 = arith.constant 0 : index
    %155 = vector.load %arg7[%c0_59, %c0_60] : memref<8x32xf32, #tpu.memory_space<vmem>>, vector<8x8xf32>
    tpu.vector_store %arg7[%c0_59, %c0_60], %154 {strides = array<i32>} : memref<8x32xf32, #tpu.memory_space<vmem>>, vector<8x8xf32>,
    %156 = vector.extract_strided_slice %134 {offsets = [0, 0, 8], sizes = [1, 8, 8], strides = [1, 1, 1]} : vector<1x8x32xf32> to vector<1x8x8xf32>
    %157 = vector.extract_strided_slice %136 {offsets = [0, 0, 8], sizes = [1, 8, 8], strides = [1, 1, 1]} : vector<1x8x32xf32> to vector<1x8x8xf32>
    %158 = vector.extract_strided_slice %138 {offsets = [0, 0, 8], sizes = [1, 8, 8], strides = [1, 1, 1]} : vector<1x8x32xf32> to vector<1x8x8xf32>
    "tpu.trace_start"() <{level = 10 : i32, message = "bqd,bkd->bqk"}> : () -> ()
    %cst_61 = arith.constant dense<0.000000e+00> : vector<1x8x8xf32>
    %159 = tpu.matmul %156, %157, %cst_61 {dimension_numbers = #tpu.dot_dimension_numbers<[2], [2], [1], [1], [0, 0, 0, 1, 1, 1], [0], [0]>} : vector<1x8x8xf32>, vector<1x8x8xf32>, vector<1x8x8xf32> -> vector<1x8x8xf32>
    "tpu.trace_stop"() : () -> ()
    %cst_62 = arith.constant dense<0xFF800000> : vector<1x8xf32>
    %160 = vector.multi_reduction <maximumf>, %159, %cst_62 [2] : vector<1x8x8xf32> to vector<1x8xf32>
    %161 = vector.shape_cast %160 : vector<1x8xf32> to vector<1x8x1xf32>
    %162 = vector.broadcast %161 : vector<1x8x1xf32> to vector<1x8x8xf32>
    %163 = arith.subf %159, %162 : vector<1x8x8xf32>
    %164 = math.exp %163 : vector<1x8x8xf32>
    %cst_63 = arith.constant dense<0.000000e+00> : vector<1x8xf32>
    %165 = vector.multi_reduction <add>, %164, %cst_63 [2] : vector<1x8x8xf32> to vector<1x8xf32>
    %166 = vector.shape_cast %165 : vector<1x8xf32> to vector<1x8x1xf32>
    %167 = tpu.reciprocal %166 : vector<1x8x1xf32> -> vector<1x8x1xf32>
    %168 = vector.broadcast %167 : vector<1x8x1xf32> to vector<1x8x8xf32>
    %169 = arith.mulf %164, %168 : vector<1x8x8xf32>
    "tpu.trace_start"() <{level = 10 : i32, message = "bqk,bkd->bqd"}> : () -> ()
    %cst_64 = arith.constant dense<0.000000e+00> : vector<1x8x8xf32>
    %170 = tpu.matmul %169, %158, %cst_64 {dimension_numbers = #tpu.dot_dimension_numbers<[2], [1], [1], [2], [0, 0, 0, 1, 1, 2], [0], [0]>} : vector<1x8x8xf32>, vector<1x8x8xf32>, vector<1x8x8xf32> -> vector<1x8x8xf32>
    "tpu.trace_stop"() : () -> ()
    %171 = vector.shape_cast %170 : vector<1x8x8xf32> to vector<8x8xf32>
    %c0_65 = arith.constant 0 : index
    %c8_66 = arith.constant 8 : index
    %172 = vector.load %arg7[%c0_65, %c8_66] : memref<8x32xf32, #tpu.memory_space<vmem>>, vector<8x8xf32>
    tpu.vector_store %arg7[%c0_65, %c8_66], %171 {strides = array<i32>} : memref<8x32xf32, #tpu.memory_space<vmem>>, vector<8x8xf32>,
    %173 = vector.extract_strided_slice %134 {offsets = [0, 0, 16], sizes = [1, 8, 8], strides = [1, 1, 1]} : vector<1x8x32xf32> to vector<1x8x8xf32>
    %174 = vector.extract_strided_slice %136 {offsets = [0, 0, 16], sizes = [1, 8, 8], strides = [1, 1, 1]} : vector<1x8x32xf32> to vector<1x8x8xf32>
    %175 = vector.extract_strided_slice %138 {offsets = [0, 0, 16], sizes = [1, 8, 8], strides = [1, 1, 1]} : vector<1x8x32xf32> to vector<1x8x8xf32>
    "tpu.trace_start"() <{level = 10 : i32, message = "bqd,bkd->bqk"}> : () -> ()
    %cst_67 = arith.constant dense<0.000000e+00> : vector<1x8x8xf32>
    %176 = tpu.matmul %173, %174, %cst_67 {dimension_numbers = #tpu.dot_dimension_numbers<[2], [2], [1], [1], [0, 0, 0, 1, 1, 1], [0], [0]>} : vector<1x8x8xf32>, vector<1x8x8xf32>, vector<1x8x8xf32> -> vector<1x8x8xf32>
    "tpu.trace_stop"() : () -> ()
    %cst_68 = arith.constant dense<0xFF800000> : vector<1x8xf32>
    %177 = vector.multi_reduction <maximumf>, %176, %cst_68 [2] : vector<1x8x8xf32> to vector<1x8xf32>
    %178 = vector.shape_cast %177 : vector<1x8xf32> to vector<1x8x1xf32>
    %179 = vector.broadcast %178 : vector<1x8x1xf32> to vector<1x8x8xf32>
    %180 = arith.subf %176, %179 : vector<1x8x8xf32>
    %181 = math.exp %180 : vector<1x8x8xf32>
    %cst_69 = arith.constant dense<0.000000e+00> : vector<1x8xf32>
    %182 = vector.multi_reduction <add>, %181, %cst_69 [2] : vector<1x8x8xf32> to vector<1x8xf32>
    %183 = vector.shape_cast %182 : vector<1x8xf32> to vector<1x8x1xf32>
    %184 = tpu.reciprocal %183 : vector<1x8x1xf32> -> vector<1x8x1xf32>
    %185 = vector.broadcast %184 : vector<1x8x1xf32> to vector<1x8x8xf32>
    %186 = arith.mulf %181, %185 : vector<1x8x8xf32>
    "tpu.trace_start"() <{level = 10 : i32, message = "bqk,bkd->bqd"}> : () -> ()
    %cst_70 = arith.constant dense<0.000000e+00> : vector<1x8x8xf32>
    %187 = tpu.matmul %186, %175, %cst_70 {dimension_numbers = #tpu.dot_dimension_numbers<[2], [1], [1], [2], [0, 0, 0, 1, 1, 2], [0], [0]>} : vector<1x8x8xf32>, vector<1x8x8xf32>, vector<1x8x8xf32> -> vector<1x8x8xf32>
    "tpu.trace_stop"() : () -> ()
    %188 = vector.shape_cast %187 : vector<1x8x8xf32> to vector<8x8xf32>
    %c0_71 = arith.constant 0 : index
    %c16_72 = arith.constant 16 : index
    %189 = vector.load %arg7[%c0_71, %c16_72] : memref<8x32xf32, #tpu.memory_space<vmem>>, vector<8x8xf32>
    tpu.vector_store %arg7[%c0_71, %c16_72], %188 {strides = array<i32>} : memref<8x32xf32, #tpu.memory_space<vmem>>, vector<8x8xf32>,
    %190 = vector.extract_strided_slice %134 {offsets = [0, 0, 24], sizes = [1, 8, 8], strides = [1, 1, 1]} : vector<1x8x32xf32> to vector<1x8x8xf32>
    %191 = vector.extract_strided_slice %136 {offsets = [0, 0, 24], sizes = [1, 8, 8], strides = [1, 1, 1]} : vector<1x8x32xf32> to vector<1x8x8xf32>
    %192 = vector.extract_strided_slice %138 {offsets = [0, 0, 24], sizes = [1, 8, 8], strides = [1, 1, 1]} : vector<1x8x32xf32> to vector<1x8x8xf32>
    "tpu.trace_start"() <{level = 10 : i32, message = "bqd,bkd->bqk"}> : () -> ()
    %cst_73 = arith.constant dense<0.000000e+00> : vector<1x8x8xf32>
    %193 = tpu.matmul %190, %191, %cst_73 {dimension_numbers = #tpu.dot_dimension_numbers<[2], [2], [1], [1], [0, 0, 0, 1, 1, 1], [0], [0]>} : vector<1x8x8xf32>, vector<1x8x8xf32>, vector<1x8x8xf32> -> vector<1x8x8xf32>
    "tpu.trace_stop"() : () -> ()
    %cst_74 = arith.constant dense<0xFF800000> : vector<1x8xf32>
    %194 = vector.multi_reduction <maximumf>, %193, %cst_74 [2] : vector<1x8x8xf32> to vector<1x8xf32>
    %195 = vector.shape_cast %194 : vector<1x8xf32> to vector<1x8x1xf32>
    %196 = vector.broadcast %195 : vector<1x8x1xf32> to vector<1x8x8xf32>
    %197 = arith.subf %193, %196 : vector<1x8x8xf32>
    %198 = math.exp %197 : vector<1x8x8xf32>
    %cst_75 = arith.constant dense<0.000000e+00> : vector<1x8xf32>
    %199 = vector.multi_reduction <add>, %198, %cst_75 [2] : vector<1x8x8xf32> to vector<1x8xf32>
    %200 = vector.shape_cast %199 : vector<1x8xf32> to vector<1x8x1xf32>
    %201 = tpu.reciprocal %200 : vector<1x8x1xf32> -> vector<1x8x1xf32>
    %202 = vector.broadcast %201 : vector<1x8x1xf32> to vector<1x8x8xf32>
    %203 = arith.mulf %198, %202 : vector<1x8x8xf32>
    "tpu.trace_start"() <{level = 10 : i32, message = "bqk,bkd->bqd"}> : () -> ()
    %cst_76 = arith.constant dense<0.000000e+00> : vector<1x8x8xf32>
    %204 = tpu.matmul %203, %192, %cst_76 {dimension_numbers = #tpu.dot_dimension_numbers<[2], [1], [1], [2], [0, 0, 0, 1, 1, 2], [0], [0]>} : vector<1x8x8xf32>, vector<1x8x8xf32>, vector<1x8x8xf32> -> vector<1x8x8xf32>
    "tpu.trace_stop"() : () -> ()
    %205 = vector.shape_cast %204 : vector<1x8x8xf32> to vector<8x8xf32>
    %c0_77 = arith.constant 0 : index
    %c24_78 = arith.constant 24 : index
    %206 = vector.load %arg7[%c0_77, %c24_78] : memref<8x32xf32, #tpu.memory_space<vmem>>, vector<8x8xf32>
    tpu.vector_store %arg7[%c0_77, %c24_78], %205 {strides = array<i32>} : memref<8x32xf32, #tpu.memory_space<vmem>>, vector<8x8xf32>,
    %c0_79 = arith.constant 0 : index
    %c0_80 = arith.constant 0 : index
    %207 = vector.load %arg7[%c0_79, %c0_80] : memref<8x32xf32, #tpu.memory_space<vmem>>, vector<8x32xf32>
    %cst_81 = arith.constant dense<0.000000e+00> : vector<8x32xf32>
    %208 = tpu.matmul %207, %121, %cst_81 {dimension_numbers = #tpu.dot_dimension_numbers<[1], [0], [0], [1], [0, 0, 1, 1], [], []>} : vector<8x32xf32>, vector<32x32xf32>, vector<8x32xf32> -> vector<8x32xf32>
    %209 = vector.broadcast %125 : vector<1x32xf32> to vector<8x32xf32>
    %210 = arith.addf %208, %209 : vector<8x32xf32>
    %211 = arith.addf %117, %210 : vector<8x32xf32>
    %cst_82 = arith.constant dense<0.000000e+00> : vector<8xf32>
    %212 = vector.multi_reduction <add>, %211, %cst_82 [1] : vector<8x32xf32> to vector<8xf32>
    %213 = vector.shape_cast %212 : vector<8xf32> to vector<8x1xf32>
    %cst_83 = arith.constant 3.200000e+01 : f32
    %214 = vector.broadcast %cst_83 : f32 to vector<8x1xf32>
    %215 = arith.divf %213, %214 : vector<8x1xf32>
    %216 = vector.broadcast %215 : vector<8x1xf32> to vector<8x32xf32>
    %217 = arith.subf %211, %216 : vector<8x32xf32>
    %218 = arith.mulf %217, %217 : vector<8x32xf32>
    %cst_84 = arith.constant dense<0.000000e+00> : vector<8xf32>
    %219 = vector.multi_reduction <add>, %218, %cst_84 [1] : vector<8x32xf32> to vector<8xf32>
    %220 = vector.shape_cast %219 : vector<8xf32> to vector<8x1xf32>
    %cst_85 = arith.constant 3.200000e+01 : f32
    %221 = vector.broadcast %cst_85 : f32 to vector<8x1xf32>
    %222 = arith.divf %220, %221 : vector<8x1xf32>
    %223 = vector.broadcast %215 : vector<8x1xf32> to vector<8x32xf32>
    %224 = arith.subf %211, %223 : vector<8x32xf32>
    %cst_86 = arith.constant 9.99999974E-6 : f32
    %225 = vector.broadcast %cst_86 : f32 to vector<8x1xf32>
    %226 = arith.addf %222, %225 : vector<8x1xf32>
    %227 = math.rsqrt %226 : vector<8x1xf32>
    %228 = vector.broadcast %227 : vector<8x1xf32> to vector<8x32xf32>
    %229 = arith.mulf %224, %228 : vector<8x32xf32>
    %230 = vector.broadcast %126 : vector<1x32xf32> to vector<8x32xf32>
    %231 = arith.mulf %229, %230 : vector<8x32xf32>
    %232 = vector.broadcast %127 : vector<1x32xf32> to vector<8x32xf32>
    %233 = arith.addf %231, %232 : vector<8x32xf32>
    %234 = vector.shape_cast %233 : vector<8x32xf32> to vector<1x8x32xf32>
    %c0_87 = arith.constant 0 : index
    %c0_88 = arith.constant 0 : index
    %c0_89 = arith.constant 0 : index
    %235 = vector.load %arg6[%c0_87, %c0_88, %c0_89] : memref<1x8x32xf32, #tpu.memory_space<vmem>>, vector<1x8x32xf32>
    tpu.vector_store %arg6[%c0_87, %c0_88, %c0_89], %234 {strides = array<i32>} : memref<1x8x32xf32, #tpu.memory_space<vmem>>, vector<1x8x32xf32>,
    return
  }
  func.func @transform_0(%arg0: i32) -> (i32, i32, i32) {
    %c0_i32 = arith.constant 0 : i32
    %c0_i32_0 = arith.constant 0 : i32
    %c0_i32_1 = arith.constant 0 : i32
    return %arg0, %c0_i32, %c0_i32_0 : i32, i32, i32
  }
  func.func @transform_1(%arg0: i32) -> (i32, i32, i32) {
    %c0_i32 = arith.constant 0 : i32
    %c0_i32_0 = arith.constant 0 : i32
    %c0_i32_1 = arith.constant 0 : i32
    %c0_i32_2 = arith.constant 0 : i32
    return %c0_i32, %c0_i32_0, %c0_i32_1 : i32, i32, i32
  }
  func.func @transform_2(%arg0: i32) -> (i32, i32, i32) {
    %c0_i32 = arith.constant 0 : i32
    %c0_i32_0 = arith.constant 0 : i32
    %c0_i32_1 = arith.constant 0 : i32
    %c0_i32_2 = arith.constant 0 : i32
    return %c0_i32, %c0_i32_0, %c0_i32_1 : i32, i32, i32
  }
  func.func @transform_3(%arg0: i32) -> (i32, i32) {
    %c0_i32 = arith.constant 0 : i32
    %c0_i32_0 = arith.constant 0 : i32
    %c0_i32_1 = arith.constant 0 : i32
    return %c0_i32, %c0_i32_0 : i32, i32
  }
  func.func @transform_4(%arg0: i32) -> (i32, i32, i32) {
    %c0_i32 = arith.constant 0 : i32
    %c0_i32_0 = arith.constant 0 : i32
    %c0_i32_1 = arith.constant 0 : i32
    %c0_i32_2 = arith.constant 0 : i32
    return %c0_i32, %c0_i32_0, %c0_i32_1 : i32, i32, i32
  }
  func.func @transform_5(%arg0: i32) -> (i32, i32, i32) {
    %c0_i32 = arith.constant 0 : i32
    %c0_i32_0 = arith.constant 0 : i32
    %c0_i32_1 = arith.constant 0 : i32
    return %arg0, %c0_i32, %c0_i32_0 : i32, i32, i32
  }
}

</mosaic_0001>

<llo_original>
// kernel: tpu_custom_call.1
$region0: #{tpu_custom_call.1}
  #allocation0 [shape = 'u32[]', space=smem, size = 0x4, offset = 0x4, fixed_abs, tag = 'smem constant byte address 0x4 - core index']
  #allocation1 [shape = 'u32[72,128]{1,0:T(1,128)}', space=vmem, size = 0x9000, scoped, tag = 'internal scratch']
  #allocation2 [shape = 'f32[8,32]{1,0:T(8,128)}', space=vmem, size = 0x1000, scoped, tag = 'scratch operand']
  %s0 = inlined_call_operand.hbm [shape: f32[2,8,32], index: 0, kind: input, shape index: {}]
  %s1 = inlined_call_operand.hbm [shape: f32[2,32,96], index: 1, kind: input, shape index: {}]
  %s2 = inlined_call_operand.hbm [shape: f32[2,32,32], index: 2, kind: input, shape index: {}]
  %s3 = inlined_call_operand.vmem [shape: f32[2,96], index: 3, kind: input, shape index: {}]
  %s4 = inlined_call_operand.vmem [shape: f32[2,3,32], index: 4, kind: input, shape index: {}]
  %s5 = inlined_call_operand.hbm [shape: f32[2,8,32], index: 5, kind: output, shape index: {}]
  %s6 = sld [smem:[#allocation0]]
  $region65: #{tpu_custom_call.1} parent=0
    _
  %s8 = ssub.s32 1, %s6
  %s9 = scalar_select 0, %s8, %s6
  $region1: #{tpu_custom_call.1} parent=0
    #allocation3 [shape = 'u8[8192]{0}', space=vmem, size = 0x2000, scoped, tag = 'input window, operand 0']
    #allocation4 [shape = 's32[2]{0}', space=sflag, size = 0x8, scoped, tag = 'scoped memory for tpu_custom_call.1']
    #allocation5 [shape = 's32[2]{0}', space=sflag, size = 0x8, scoped, tag = 'scoped memory for tpu_custom_call.1']
    #allocation6 [shape = 'u8[32768]{0}', space=vmem, size = 0x8000, scoped, tag = 'input window, operand 1, single buffered']
    #allocation7 [shape = 's32[1]{0}', space=sflag, size = 0x4, scoped, tag = 'scoped memory for tpu_custom_call.1']
    #allocation8 [shape = 'u8[32768]{0}', space=vmem, size = 0x8000, scoped, tag = 'input window, operand 2, single buffered']
    #allocation9 [shape = 'u8[8192]{0}', space=vmem, size = 0x2000, scoped, tag = 'output window, operand 0']
    %10 = vsyncpa [#allocation4], 0
    %s11 = scalar_lea.sflag [#allocation4], 1
    %12 = vsyncpa %s11, 0
    %13 = vsyncpa [#allocation7], 0
    %14 = vsyncpa [#allocation5], 0
    %s15 = scalar_lea.sflag [#allocation5], 1
    %16 = vsyncpa %s15, 0
    loop: start=0, step=1, limit=4
    $region2: #{tpu_custom_call.1} parent=1 // loop_pre_header
      _
    $region3: #{tpu_custom_call.1} parent=1 // loop_header
      %s18 = sphi 0, %s22
      %p19 = scmp.ge.s32.totalorder %s18, 4
      %s28 = sphi 0, %s30
      %s31 = sphi 0, %s28
      %s32 = sphi 0, %s31
      %s48 = sphi 0, %s32
      %s52 = sphi 0, %s52
      %s54 = sphi 0, %s52
      %s55 = sphi 0, %s54
      %s69 = sphi 0, %s55
      %s73 = sphi 0, %s73
      %s75 = sphi 0, %s73
      %s76 = sphi 0, %s75
      %s90 = sphi 0, %s76
      %s94 = sphi 0, %s94
      %s96 = sphi 0, %s94
      %s97 = sphi 0, %s96
      %s111 = sphi 0, %s97
      %s115 = sphi 0, %s115
      %s117 = sphi 0, %s115
      %s118 = sphi 0, %s117
      %s132 = sphi 0, %s118
      %s138 = sphi 0, %s140
      %s141 = sphi 0, %s138
      %s142 = sphi 0, %s141
      %s158 = sphi 0, %s142
    $region4: #{tpu_custom_call.1} parent=1 // loop_header_branch
      %21 = sbr.rel (%p19) target = $region8
    $region5: #{tpu_custom_call.1} parent=1 // loop_body
      %s23 = ssub.s32 %s18, 1
      %s24 = ssub.s32 %s18, 2
      %s25 = sadd.s32 %s18, 1
      %s26 = ssub.s32 %s18, %s25
      %p27 = scmp.eq.s32.totalorder %s26, 0
      %s29 = sadd.s32 %s28, 1
      %s30 = scalar_select %p27, %s28, %s29
      %p33 = pneg %p27
      %p34 = scmp.eq.s32.totalorder %s18, 1
      %p35 = por %p33, %p34
      %p36 = scmp.ne.s32.totalorder %s28, %s31
      %p37 = scmp.eq.s32.totalorder %s18, 0
      %p38 = por %p36, %p37
      %p39 = scmp.ne.s32.totalorder %s28, %s31
      %p40 = scmp.eq.s32.totalorder %s23, 1
      %p41 = por %p39, %p40
      %p42 = scmp.ne.s32.totalorder %s31, %s32
      %p43 = scmp.eq.s32.totalorder %s23, 0
      %p44 = por %p42, %p43
      %p45 = scmp.ne.s32.totalorder %s31, %s32
      %p46 = scmp.eq.s32.totalorder %s24, 1
      %p47 = por %p45, %p46
      %p49 = scmp.ne.s32.totalorder %s32, %s48
      %p50 = scmp.eq.s32.totalorder %s24, 0
      %p51 = por %p49, %p50
      %s53 = sadd.s32 %s52, 1
      %p56 = scmp.eq.s32.totalorder %s18, 1
      %p57 = scmp.ne.s32.totalorder %s52, %s54
      %p58 = scmp.eq.s32.totalorder %s18, 0
      %p59 = por %p57, %p58
      %p60 = scmp.ne.s32.totalorder %s52, %s54
      %p61 = scmp.eq.s32.totalorder %s23, 1
      %p62 = por %p60, %p61
      %p63 = scmp.ne.s32.totalorder %s54, %s55
      %p64 = scmp.eq.s32.totalorder %s23, 0
      %p65 = por %p63, %p64
      %p66 = scmp.ne.s32.totalorder %s54, %s55
      %p67 = scmp.eq.s32.totalorder %s24, 1
      %p68 = por %p66, %p67
      %p70 = scmp.ne.s32.totalorder %s55, %s69
      %p71 = scmp.eq.s32.totalorder %s24, 0
      %p72 = por %p70, %p71
      %s74 = sadd.s32 %s73, 1
      %p77 = scmp.eq.s32.totalorder %s18, 1
      %p78 = scmp.ne.s32.totalorder %s73, %s75
      %p79 = scmp.eq.s32.totalorder %s18, 0
      %p80 = por %p78, %p79
      %p81 = scmp.ne.s32.totalorder %s73, %s75
      %p82 = scmp.eq.s32.totalorder %s23, 1
      %p83 = por %p81, %p82
      %p84 = scmp.ne.s32.totalorder %s75, %s76
      %p85 = scmp.eq.s32.totalorder %s23, 0
      %p86 = por %p84, %p85
      %p87 = scmp.ne.s32.totalorder %s75, %s76
      %p88 = scmp.eq.s32.totalorder %s24, 1
      %p89 = por %p87, %p88
      %p91 = scmp.ne.s32.totalorder %s76, %s90
      %p92 = scmp.eq.s32.totalorder %s24, 0
      %p93 = por %p91, %p92
      %s95 = sadd.s32 %s94, 1
      %p98 = scmp.eq.s32.totalorder %s18, 1
      %p99 = scmp.ne.s32.totalorder %s94, %s96
      %p100 = scmp.eq.s32.totalorder %s18, 0
      %p101 = por %p99, %p100
      %p102 = scmp.ne.s32.totalorder %s94, %s96
      %p103 = scmp.eq.s32.totalorder %s23, 1
      %p104 = por %p102, %p103
      %p105 = scmp.ne.s32.totalorder %s96, %s97
      %p106 = scmp.eq.s32.totalorder %s23, 0
      %p107 = por %p105, %p106
      %p108 = scmp.ne.s32.totalorder %s96, %s97
      %p109 = scmp.eq.s32.totalorder %s24, 1
      %p110 = por %p108, %p109
      %p112 = scmp.ne.s32.totalorder %s97, %s111
      %p113 = scmp.eq.s32.totalorder %s24, 0
      %p114 = por %p112, %p113
      %s116 = sadd.s32 %s115, 1
      %p119 = scmp.eq.s32.totalorder %s18, 1
      %p120 = scmp.ne.s32.totalorder %s115, %s117
      %p121 = scmp.eq.s32.totalorder %s18, 0
      %p122 = por %p120, %p121
      %p123 = scmp.ne.s32.totalorder %s115, %s117
      %p124 = scmp.eq.s32.totalorder %s23, 1
      %p125 = por %p123, %p124
      %p126 = scmp.ne.s32.totalorder %s117, %s118
      %p127 = scmp.eq.s32.totalorder %s23, 0
      %p128 = por %p126, %p127
      %p129 = scmp.ne.s32.totalorder %s117, %s118
      %p130 = scmp.eq.s32.totalorder %s24, 1
      %p131 = por %p129, %p130
      %p133 = scmp.ne.s32.totalorder %s118, %s132
      %p134 = scmp.eq.s32.totalorder %s24, 0
      %p135 = por %p133, %p134
      %s136 = ssub.s32 %s18, %s25
      %p137 = scmp.eq.s32.totalorder %s136, 0
      %s139 = sadd.s32 %s138, 1
      %s140 = scalar_select %p137, %s138, %s139
      %p143 = pneg %p137
      %p144 = scmp.eq.s32.totalorder %s18, 1
      %p145 = por %p143, %p144
      %p146 = scmp.ne.s32.totalorder %s138, %s141
      %p147 = scmp.eq.s32.totalorder %s18, 0
      %p148 = por %p146, %p147
      %p149 = scmp.ne.s32.totalorder %s138, %s141
      %p150 = scmp.eq.s32.totalorder %s23, 1
      %p151 = por %p149, %p150
      %p152 = scmp.ne.s32.totalorder %s141, %s142
      %p153 = scmp.eq.s32.totalorder %s23, 0
      %p154 = por %p152, %p153
      %p155 = scmp.ne.s32.totalorder %s141, %s142
      %p156 = scmp.eq.s32.totalorder %s24, 1
      %p157 = por %p155, %p156
      %p159 = scmp.ne.s32.totalorder %s142, %s158
      %p160 = scmp.eq.s32.totalorder %s24, 0
      %p161 = por %p159, %p160
      %p162 = scmp.le.s32.totalorder 1, %s18
      %p163 = scmp.lt.s32.totalorder %s18, 3
      %p164 = pnand %p162, %p163
      %p165 = pneg %p164
      // Predicated region
      $region9: #{tpu_custom_call.1} parent=5 // pred_check
        _
      $region10: #{tpu_custom_call.1} parent=5 // pred_check_branch
        %167 = sbr.rel (%p164) target = $region12
      $region11: #{tpu_custom_call.1} parent=5 // pred_region
        %s168 = ssub.s32 %s18, 1
        // Predicated region
        $region13: #{tpu_custom_call.1} parent=11 // pred_check
          %p169 = pneg %p65
        $region14: #{tpu_custom_call.1} parent=11 // pred_check_branch
          %171 = sbr.rel (%p169) target = $region16
        $region15: #{tpu_custom_call.1} parent=11 // pred_region
          %173 = vsyncadd [#allocation7], 0
          %s174 = sshll.u32 %s1, 4
          %s175 = int_to_ptr.hbm [resolvable:$true] %s174
          %s176 = sshll.u32 [#allocation6], 4
          %s177 = int_to_ptr.vmem [resolvable:$true] %s176
          %182 = dma.hbm_to_vmem [thread:$0]  %s175, 1024, %s177, [#allocation7], 128, 128, 8
        $region16: #{tpu_custom_call.1} parent=11 // pred_fallthru
          _
        // Predicated region
        $region17: #{tpu_custom_call.1} parent=11 // pred_check
          %p183 = pneg %p86
        $region18: #{tpu_custom_call.1} parent=11 // pred_check_branch
          %185 = sbr.rel (%p183) target = $region20
        $region19: #{tpu_custom_call.1} parent=11 // pred_region
          %187 = vsyncadd [#allocation7], 0
          %s188 = sshll.u32 %s2, 4
          %s189 = int_to_ptr.hbm [resolvable:$true] %s188
          %s190 = sshll.u32 [#allocation8], 4
          %s191 = int_to_ptr.vmem [resolvable:$true] %s190
          %196 = dma.hbm_to_vmem [thread:$0]  %s189, 1024, %s191, [#allocation7], 128, 128, 8
        $region20: #{tpu_custom_call.1} parent=11 // pred_fallthru
          _
        // Predicated region
        $region21: #{tpu_custom_call.1} parent=11 // pred_check
          %p197 = pneg %p107
        $region22: #{tpu_custom_call.1} parent=11 // pred_check_branch
          %199 = sbr.rel (%p197) target = $region24
        $region23: #{tpu_custom_call.1} parent=11 // pred_region
          _
        $region24: #{tpu_custom_call.1} parent=11 // pred_fallthru
          _
        // Predicated region
        $region25: #{tpu_custom_call.1} parent=11 // pred_check
          %p200 = pneg %p128
        $region26: #{tpu_custom_call.1} parent=11 // pred_check_branch
          %202 = sbr.rel (%p200) target = $region28
        $region27: #{tpu_custom_call.1} parent=11 // pred_region
          _
        $region28: #{tpu_custom_call.1} parent=11 // pred_fallthru
          _
      $region12: #{tpu_custom_call.1} parent=5 // pred_fallthru
        _
      %p203 = scmp.lt.s32.totalorder %s18, 2
      // Predicated region
      $region29: #{tpu_custom_call.1} parent=5 // pred_check
        %p204 = pneg %p203
      $region30: #{tpu_custom_call.1} parent=5 // pred_check_branch
        %206 = sbr.rel (%p204) target = $region32
      $region31: #{tpu_custom_call.1} parent=5 // pred_region
        // Predicated region
        $region33: #{tpu_custom_call.1} parent=31 // pred_check
          %p207 = pneg %p38
        $region34: #{tpu_custom_call.1} parent=31 // pred_check_branch
          %209 = sbr.rel (%p207) target = $region36
        $region35: #{tpu_custom_call.1} parent=31 // pred_region
          %s210 = sand.u32 %s28, 1
          %s211 = scalar_lea.sflag [#allocation4], %s210
          %s212 = sand.u32 %s28, 1
          %s213 = smul.addr %s212, 8
          %s214 = scalar_lea.vmem [#allocation3], %s213
          %216 = vsyncadd %s211, 0
          %s217 = smul.addr %s18, 8
          %s218 = scalar_lea.hbm %s0, %s217
          %s220 = sshll.u32 %s218, 4
          %s221 = int_to_ptr.hbm [resolvable:$true] %s220
          %s222 = sshll.u32 %s214, 4
          %s223 = int_to_ptr.vmem [resolvable:$true] %s222
          %225 = dma.hbm_to_vmem [thread:$0]  %s221, 128, %s223, %s211
        $region36: #{tpu_custom_call.1} parent=31 // pred_fallthru
          _
      $region32: #{tpu_custom_call.1} parent=5 // pred_fallthru
        _
      %p226 = scmp.le.s32.totalorder 1, %s18
      %p227 = scmp.lt.s32.totalorder %s18, 3
      %p228 = pnand %p226, %p227
      %p229 = pneg %p228
      // Predicated region
      $region37: #{tpu_custom_call.1} parent=5 // pred_check
        _
      $region38: #{tpu_custom_call.1} parent=5 // pred_check_branch
        %231 = sbr.rel (%p228) target = $region40
      $region39: #{tpu_custom_call.1} parent=5 // pred_region
        %s232 = ssub.s32 %s18, 1
        %s233 = sand.u32 %s31, 1
        %s234 = scalar_lea.sflag [#allocation4], %s233
        %s235 = sand.u32 %s31, 1
        %s236 = smul.addr %s235, 8
        %s237 = scalar_lea.vmem [#allocation3], %s236
        // Predicated region
        $region41: #{tpu_custom_call.1} parent=39 // pred_check
          %p238 = pneg %p44
        $region42: #{tpu_custom_call.1} parent=39 // pred_check_branch
          %240 = sbr.rel (%p238) target = $region44
        $region43: #{tpu_custom_call.1} parent=39 // pred_region
          %242 = dma.done %s234, 128
        $region44: #{tpu_custom_call.1} parent=39 // pred_fallthru
          _
        // Predicated region
        $region45: #{tpu_custom_call.1} parent=39 // pred_check
          %p243 = pneg %p65
        $region46: #{tpu_custom_call.1} parent=39 // pred_check_branch
          %245 = sbr.rel (%p243) target = $region48
        $region47: #{tpu_custom_call.1} parent=39 // pred_region
          %247 = dma.done [#allocation7], 1024
        $region48: #{tpu_custom_call.1} parent=39 // pred_fallthru
          _
        // Predicated region
        $region49: #{tpu_custom_call.1} parent=39 // pred_check
          %p248 = pneg %p86
        $region50: #{tpu_custom_call.1} parent=39 // pred_check_branch
          %250 = sbr.rel (%p248) target = $region52
        $region51: #{tpu_custom_call.1} parent=39 // pred_region
          %252 = dma.done [#allocation7], 1024
        $region52: #{tpu_custom_call.1} parent=39 // pred_fallthru
          _
        %s253 = sand.u32 %s31, 1
        %s254 = scalar_lea.sflag [#allocation4], %s253
        %s255 = sand.u32 %s31, 1
        %s256 = smul.addr %s255, 8
        %s257 = scalar_lea.vmem [#allocation3], %s256
        %p258 = pneg %p44
        %p259 = pneg %p41
        %p260 = pneg %p65
        %p261 = pneg %p62
        %p262 = pneg %p86
        %p263 = pneg %p83
        %p264 = pneg %p107
        %p265 = pneg %p104
        %p266 = pneg %p128
        %p267 = pneg %p125
        %p268 = pneg %p154
        %p269 = pneg %p151
        %s270 = sand.u32 %s141, 1
        %s271 = scalar_lea.sflag [#allocation5], %s270
        %s272 = sand.u32 %s141, 1
        %s273 = smul.addr %s272, 8
        %s274 = scalar_lea.vmem [#allocation9], %s273
        %v275 = vld [vmem:[%s237] sm:$0xff]
        %v276 = vld [vmem:[#allocation6] sm:$0xff]
        %v277 = vld [vmem:[#allocation6 + $0x8] sm:$0xff]
        %v278 = vld [vmem:[#allocation6 + $0x10] sm:$0xff]
        %v279 = vld [vmem:[#allocation6 + $0x18] sm:$0xff]
        %v280 = vld [vmem:[#allocation8] sm:$0xff]
        %v281 = vld [vmem:[#allocation8 + $0x8] sm:$0xff]
        %v282 = vld [vmem:[#allocation8 + $0x10] sm:$0xff]
        %v283 = vld [vmem:[#allocation8 + $0x18] sm:$0xff]
        %v284 = vld [vmem:[%s3] sm:$0x1]
        %v285 = vld [vmem:[%s4] sm:$0x7]
        %v286 = vperm.slane %v284, 0
        %vm287 = vcmask 261120
        %v289 = vsel %vm287, %v275, 0
        %291 = vmatpush.msra.mxu0 0.0
        %292 = vmatpush.msra.mxu0 0.0
        %293 = vmatpush.msra.mxu0 0.0
        %294 = vmatpush.msra.mxu0 0.0
        %295 = vmatpush.msra.mxu0 0.0
        %296 = vmatpush.msra.mxu0 0.0
        %297 = vmatpush.msra.mxu0 0.0
        %298 = vmatpush.msra.mxu0 0.0
        %299 = vmatpush.msra.mxu0 0.0
        %300 = vmatpush.msra.mxu0 0.0
        %301 = vmatpush.msra.mxu0 0.0
        %302 = vmatpush.msra.mxu0 0.0
        %303 = vmatpush.msra.mxu0 %v279
        %304 = vmatpush.msra.mxu0 %v278
        %305 = vmatpush.msra.mxu0 %v277
        %306 = vmatpush.msra.mxu0 %v276
        %307 = vmatmul.f32.gmra.mxu0 %v289
        %v308 = vpop.f32.mrf.mxu0
        %v309 = vadd.f32 %v286, %v308
        %310 = vdwg.mxu0
        %v311 = vmul.f32 %v309, 0.35355338
        %313 = vrot.lane.b32.xlu0 %v309, 96
        %v314 = vpop.permute.xlu0 %313
        %vm315 = vcmask 64512
        %v317 = vsel %vm315, %v311, 0
        %v319 = vsel %vm315, %v314, 0
        %321 = vmatpush.xpose.msra.mxu0 0.0
        %322 = vmatpush.xpose.msra.mxu0 0.0
        %323 = vmatpush.xpose.msra.mxu0 0.0
        %324 = vmatpush.xpose.msra.mxu0 0.0
        %325 = vmatpush.xpose.msra.mxu0 0.0
        %326 = vmatpush.xpose.msra.mxu0 0.0
        %327 = vmatpush.xpose.msra.mxu0 0.0
        %328 = vmatpush.xpose.msra.mxu0 0.0
        %329 = vmatpush.xpose.msra.mxu0 0.0
        %330 = vmatpush.xpose.msra.mxu0 0.0
        %331 = vmatpush.xpose.msra.mxu0 0.0
        %332 = vmatpush.xpose.msra.mxu0 0.0
        %333 = vmatpush.xpose.msra.mxu0 0.0
        %334 = vmatpush.xpose.msra.mxu0 0.0
        %335 = vmatpush.xpose.msra.mxu0 0.0
        %336 = vmatpush.xpose.msra.mxu0 %v319
        %337 = vmatmul.f32.gmra.mxu0 %v317
        %v338 = vpop.f32.mrf.mxu0
        %v339 = vadd.f32 0.0, %v338
        %340 = vdwg.mxu0
        %v341 = vsel %vm315, %v339, -inf
        %342 = vmax.xlane.f32.xlu0 %v341
        %v343 = vpop.xlane.xlu0 %342
        %v344 = vsub.f32 %v339, %v343
        %v345 = vmul.f32 %v344, 1.442695
        %v346 = vpow.pop %v345
        %v347 = vsel %vm315, %v346, 0.0
        %348 = vadd.xlane.f32.xlu0 %v347
        %v349 = vpop.xlane.xlu0 %348
        %v350 = vrcp.pop %v349
        %v351 = vmul.f32 %v349, %v350
        %v352 = vsub.f32 1.0, %v351
        %v353 = vmul.f32 %v350, %v352
        %v354 = vadd.f32 %v350, %v353
        %vm355 = vweird.f32 %v349
        %vm356 = vweird.f32 %v350
        %vm357 = vmor %vm355, %vm356
        %v358 = vsel %vm357, %v350, %v354
        %v359 = vand.u32 2147483647, %v349
        %vm360 = vcmp.eq.f32.partialorder %v359, 8.507059e+37
        %v361 = vand.u32 %v349, 2147483648
        %v362 = vor.u32 1.1754944e-38, %v361
        %v363 = vsel %vm360, %v362, %v358
        %v364 = vmul.f32 %v346, %v363
        %365 = vrot.lane.b32.xlu0 %v309, 64
        %v366 = vpop.permute.xlu0 %365
        %v369 = vsel %vm315, %v364, 0
        %371 = vmatpush.msra.mxu0 0.0
        %372 = vmatpush.msra.mxu0 0.0
        %373 = vmatpush.msra.mxu0 0.0
        %374 = vmatpush.msra.mxu0 0.0
        %375 = vmatpush.msra.mxu0 0.0
        %376 = vmatpush.msra.mxu0 0.0
        %377 = vmatpush.msra.mxu0 0.0
        %378 = vmatpush.msra.mxu0 0.0
        %379 = vmatpush.msra.mxu0 0.0
        %380 = vmatpush.msra.mxu0 0.0
        %381 = vmatpush.msra.mxu0 0.0
        %382 = vmatpush.msra.mxu0 0.0
        %383 = vmatpush.msra.mxu0 0.0
        %384 = vmatpush.msra.mxu0 0.0
        %385 = vmatpush.msra.mxu0 0.0
        %386 = vmatpush.msra.mxu0 %v366
        %387 = vmatmul.f32.gmra.mxu0 %v369
        %v388 = vpop.f32.mrf.mxu0
        %v389 = vadd.f32 0.0, %v388
        %390 = vdwg.mxu0
        %391 = vst.msk [vmem:[#allocation2] sm:$0xff] %vm315, %v389
        %392 = vrot.lane.b32.xlu0 %v311, 120
        %v393 = vpop.permute.xlu0 %392
        %394 = vrot.lane.b32.xlu0 %v309, 88
        %v395 = vpop.permute.xlu0 %394
        %v396 = vsel %vm315, %v393, 0
        %v398 = vsel %vm315, %v395, 0
        %400 = vmatpush.xpose.msra.mxu0 0.0
        %401 = vmatpush.xpose.msra.mxu0 0.0
        %402 = vmatpush.xpose.msra.mxu0 0.0
        %403 = vmatpush.xpose.msra.mxu0 0.0
        %404 = vmatpush.xpose.msra.mxu0 0.0
        %405 = vmatpush.xpose.msra.mxu0 0.0
        %406 = vmatpush.xpose.msra.mxu0 0.0
        %407 = vmatpush.xpose.msra.mxu0 0.0
        %408 = vmatpush.xpose.msra.mxu0 0.0
        %409 = vmatpush.xpose.msra.mxu0 0.0
        %410 = vmatpush.xpose.msra.mxu0 0.0
        %411 = vmatpush.xpose.msra.mxu0 0.0
        %412 = vmatpush.xpose.msra.mxu0 0.0
        %413 = vmatpush.xpose.msra.mxu0 0.0
        %414 = vmatpush.xpose.msra.mxu0 0.0
        %415 = vmatpush.xpose.msra.mxu0 %v398
        %416 = vmatmul.f32.gmra.mxu0 %v396
        %v417 = vpop.f32.mrf.mxu0
        %v418 = vadd.f32 0.0, %v417
        %419 = vdwg.mxu0
        %v420 = vsel %vm315, %v418, -inf
        %421 = vmax.xlane.f32.xlu0 %v420
        %v422 = vpop.xlane.xlu0 %421
        %v423 = vsub.f32 %v418, %v422
        %v424 = vmul.f32 %v423, 1.442695
        %v425 = vpow.pop %v424
        %v426 = vsel %vm315, %v425, 0.0
        %427 = vadd.xlane.f32.xlu0 %v426
        %v428 = vpop.xlane.xlu0 %427
        %v429 = vrcp.pop %v428
        %v430 = vmul.f32 %v428, %v429
        %v431 = vsub.f32 1.0, %v430
        %v432 = vmul.f32 %v429, %v431
        %v433 = vadd.f32 %v429, %v432
        %vm434 = vweird.f32 %v428
        %vm435 = vweird.f32 %v429
        %vm436 = vmor %vm434, %vm435
        %v437 = vsel %vm436, %v429, %v433
        %v438 = vand.u32 2147483647, %v428
        %vm439 = vcmp.eq.f32.partialorder %v438, 8.507059e+37
        %v440 = vand.u32 %v428, 2147483648
        %v441 = vor.u32 1.1754944e-38, %v440
        %v442 = vsel %vm439, %v441, %v437
        %v443 = vmul.f32 %v425, %v442
        %444 = vrot.lane.b32.xlu0 %v309, 56
        %v445 = vpop.permute.xlu0 %444
        %v448 = vsel %vm315, %v443, 0
        %450 = vmatpush.msra.mxu0 0.0
        %451 = vmatpush.msra.mxu0 0.0
        %452 = vmatpush.msra.mxu0 0.0
        %453 = vmatpush.msra.mxu0 0.0
        %454 = vmatpush.msra.mxu0 0.0
        %455 = vmatpush.msra.mxu0 0.0
        %456 = vmatpush.msra.mxu0 0.0
        %457 = vmatpush.msra.mxu0 0.0
        %458 = vmatpush.msra.mxu0 0.0
        %459 = vmatpush.msra.mxu0 0.0
        %460 = vmatpush.msra.mxu0 0.0
        %461 = vmatpush.msra.mxu0 0.0
        %462 = vmatpush.msra.mxu0 0.0
        %463 = vmatpush.msra.mxu0 0.0
        %464 = vmatpush.msra.mxu0 0.0
        %465 = vmatpush.msra.mxu0 %v445
        %466 = vmatmul.f32.gmra.mxu0 %v448
        %v467 = vpop.f32.mrf.mxu0
        %v468 = vadd.f32 0.0, %v467
        %469 = vdwg.mxu0
        %471 = vrot.lane.b32.xlu0 %v468, 8
        %v472 = vpop.permute.xlu0 %471
        %vm474 = vcmask 130112
        %475 = vst.msk [vmem:[#allocation2] sm:$0xff] %vm474, %v472
        %476 = vrot.lane.b32.xlu0 %v311, 112
        %v477 = vpop.permute.xlu0 %476
        %478 = vrot.lane.b32.xlu0 %v309, 80
        %v479 = vpop.permute.xlu0 %478
        %v480 = vsel %vm315, %v477, 0
        %v482 = vsel %vm315, %v479, 0
        %484 = vmatpush.xpose.msra.mxu0 0.0
        %485 = vmatpush.xpose.msra.mxu0 0.0
        %486 = vmatpush.xpose.msra.mxu0 0.0
        %487 = vmatpush.xpose.msra.mxu0 0.0
        %488 = vmatpush.xpose.msra.mxu0 0.0
        %489 = vmatpush.xpose.msra.mxu0 0.0
        %490 = vmatpush.xpose.msra.mxu0 0.0
        %491 = vmatpush.xpose.msra.mxu0 0.0
        %492 = vmatpush.xpose.msra.mxu0 0.0
        %493 = vmatpush.xpose.msra.mxu0 0.0
        %494 = vmatpush.xpose.msra.mxu0 0.0
        %495 = vmatpush.xpose.msra.mxu0 0.0
        %496 = vmatpush.xpose.msra.mxu0 0.0
        %497 = vmatpush.xpose.msra.mxu0 0.0
        %498 = vmatpush.xpose.msra.mxu0 0.0
        %499 = vmatpush.xpose.msra.mxu0 %v482
        %500 = vmatmul.f32.gmra.mxu0 %v480
        %v501 = vpop.f32.mrf.mxu0
        %v502 = vadd.f32 0.0, %v501
        %503 = vdwg.mxu0
        %v504 = vsel %vm315, %v502, -inf
        %505 = vmax.xlane.f32.xlu0 %v504
        %v506 = vpop.xlane.xlu0 %505
        %v507 = vsub.f32 %v502, %v506
        %v508 = vmul.f32 %v507, 1.442695
        %v509 = vpow.pop %v508
        %v510 = vsel %vm315, %v509, 0.0
        %511 = vadd.xlane.f32.xlu0 %v510
        %v512 = vpop.xlane.xlu0 %511
        %v513 = vrcp.pop %v512
        %v514 = vmul.f32 %v512, %v513
        %v515 = vsub.f32 1.0, %v514
        %v516 = vmul.f32 %v513, %v515
        %v517 = vadd.f32 %v513, %v516
        %vm518 = vweird.f32 %v512
        %vm519 = vweird.f32 %v513
        %vm520 = vmor %vm518, %vm519
        %v521 = vsel %vm520, %v513, %v517
        %v522 = vand.u32 2147483647, %v512
        %vm523 = vcmp.eq.f32.partialorder %v522, 8.507059e+37
        %v524 = vand.u32 %v512, 2147483648
        %v525 = vor.u32 1.1754944e-38, %v524
        %v526 = vsel %vm523, %v525, %v521
        %v527 = vmul.f32 %v509, %v526
        %528 = vrot.lane.b32.xlu0 %v309, 48
        %v529 = vpop.permute.xlu0 %528
        %v532 = vsel %vm315, %v527, 0
        %534 = vmatpush.msra.mxu0 0.0
        %535 = vmatpush.msra.mxu0 0.0
        %536 = vmatpush.msra.mxu0 0.0
        %537 = vmatpush.msra.mxu0 0.0
        %538 = vmatpush.msra.mxu0 0.0
        %539 = vmatpush.msra.mxu0 0.0
        %540 = vmatpush.msra.mxu0 0.0
        %541 = vmatpush.msra.mxu0 0.0
        %542 = vmatpush.msra.mxu0 0.0
        %543 = vmatpush.msra.mxu0 0.0
        %544 = vmatpush.msra.mxu0 0.0
        %545 = vmatpush.msra.mxu0 0.0
        %546 = vmatpush.msra.mxu0 0.0
        %547 = vmatpush.msra.mxu0 0.0
        %548 = vmatpush.msra.mxu0 0.0
        %549 = vmatpush.msra.mxu0 %v529
        %550 = vmatmul.f32.gmra.mxu0 %v532
        %v551 = vpop.f32.mrf.mxu0
        %v552 = vadd.f32 0.0, %v551
        %553 = vdwg.mxu0
        %555 = vrot.lane.b32.xlu0 %v552, 16
        %v556 = vpop.permute.xlu0 %555
        %vm558 = vcmask 195712
        %559 = vst.msk [vmem:[#allocation2] sm:$0xff] %vm558, %v556
        %560 = vrot.lane.b32.xlu0 %v311, 104
        %v561 = vpop.permute.xlu0 %560
        %562 = vrot.lane.b32.xlu0 %v309, 72
        %v563 = vpop.permute.xlu0 %562
        %v564 = vsel %vm315, %v561, 0
        %v566 = vsel %vm315, %v563, 0
        %568 = vmatpush.xpose.msra.mxu0 0.0
        %569 = vmatpush.xpose.msra.mxu0 0.0
        %570 = vmatpush.xpose.msra.mxu0 0.0
        %571 = vmatpush.xpose.msra.mxu0 0.0
        %572 = vmatpush.xpose.msra.mxu0 0.0
        %573 = vmatpush.xpose.msra.mxu0 0.0
        %574 = vmatpush.xpose.msra.mxu0 0.0
        %575 = vmatpush.xpose.msra.mxu0 0.0
        %576 = vmatpush.xpose.msra.mxu0 0.0
        %577 = vmatpush.xpose.msra.mxu0 0.0
        %578 = vmatpush.xpose.msra.mxu0 0.0
        %579 = vmatpush.xpose.msra.mxu0 0.0
        %580 = vmatpush.xpose.msra.mxu0 0.0
        %581 = vmatpush.xpose.msra.mxu0 0.0
        %582 = vmatpush.xpose.msra.mxu0 0.0
        %583 = vmatpush.xpose.msra.mxu0 %v566
        %584 = vmatmul.f32.gmra.mxu0 %v564
        %v585 = vpop.f32.mrf.mxu0
        %v586 = vadd.f32 0.0, %v585
        %587 = vdwg.mxu0
        %v588 = vsel %vm315, %v586, -inf
        %589 = vmax.xlane.f32.xlu0 %v588
        %v590 = vpop.xlane.xlu0 %589
        %v591 = vsub.f32 %v586, %v590
        %v592 = vmul.f32 %v591, 1.442695
        %v593 = vpow.pop %v592
        %v594 = vsel %vm315, %v593, 0.0
        %595 = vadd.xlane.f32.xlu0 %v594
        %v596 = vpop.xlane.xlu0 %595
        %v597 = vrcp.pop %v596
        %v598 = vmul.f32 %v596, %v597
        %v599 = vsub.f32 1.0, %v598
        %v600 = vmul.f32 %v597, %v599
        %v601 = vadd.f32 %v597, %v600
        %vm602 = vweird.f32 %v596
        %vm603 = vweird.f32 %v597
        %vm604 = vmor %vm602, %vm603
        %v605 = vsel %vm604, %v597, %v601
        %v606 = vand.u32 2147483647, %v596
        %vm607 = vcmp.eq.f32.partialorder %v606, 8.507059e+37
        %v608 = vand.u32 %v596, 2147483648
        %v609 = vor.u32 1.1754944e-38, %v608
        %v610 = vsel %vm607, %v609, %v605
        %v611 = vmul.f32 %v593, %v610
        %612 = vrot.lane.b32.xlu0 %v309, 40
        %v613 = vpop.permute.xlu0 %612
        %v616 = vsel %vm315, %v611, 0
        %618 = vmatpush.msra.mxu0 0.0
        %619 = vmatpush.msra.mxu0 0.0
        %620 = vmatpush.msra.mxu0 0.0
        %621 = vmatpush.msra.mxu0 0.0
        %622 = vmatpush.msra.mxu0 0.0
        %623 = vmatpush.msra.mxu0 0.0
        %624 = vmatpush.msra.mxu0 0.0
        %625 = vmatpush.msra.mxu0 0.0
        %626 = vmatpush.msra.mxu0 0.0
        %627 = vmatpush.msra.mxu0 0.0
        %628 = vmatpush.msra.mxu0 0.0
        %629 = vmatpush.msra.mxu0 0.0
        %630 = vmatpush.msra.mxu0 0.0
        %631 = vmatpush.msra.mxu0 0.0
        %632 = vmatpush.msra.mxu0 0.0
        %633 = vmatpush.msra.mxu0 %v613
        %634 = vmatmul.f32.gmra.mxu0 %v616
        %v635 = vpop.f32.mrf.mxu0
        %v636 = vadd.f32 0.0, %v635
        %637 = vdwg.mxu0
        %639 = vrot.lane.b32.xlu0 %v636, 24
        %v640 = vpop.permute.xlu0 %639
        %vm642 = vcmask 261312
        %643 = vst.msk [vmem:[#allocation2] sm:$0xff] %vm642, %v640
        %v644 = vld [vmem:[#allocation2] sm:$0xff]
        %v645 = vperm.slane %v285, 0
        %v647 = vsel %vm287, %v644, 0
        %649 = vmatpush.msra.mxu0 0.0
        %650 = vmatpush.msra.mxu0 0.0
        %651 = vmatpush.msra.mxu0 0.0
        %652 = vmatpush.msra.mxu0 0.0
        %653 = vmatpush.msra.mxu0 0.0
        %654 = vmatpush.msra.mxu0 0.0
        %655 = vmatpush.msra.mxu0 0.0
        %656 = vmatpush.msra.mxu0 0.0
        %657 = vmatpush.msra.mxu0 0.0
        %658 = vmatpush.msra.mxu0 0.0
        %659 = vmatpush.msra.mxu0 0.0
        %660 = vmatpush.msra.mxu0 0.0
        %661 = vmatpush.msra.mxu0 %v283
        %662 = vmatpush.msra.mxu0 %v282
        %663 = vmatpush.msra.mxu0 %v281
        %664 = vmatpush.msra.mxu0 %v280
        %665 = vmatmul.f32.gmra.mxu0 %v647
        %v666 = vpop.f32.mrf.mxu0
        %v667 = vadd.f32 %v645, %v666
        %668 = vdwg.mxu0
        %v669 = vadd.f32 %v275, %v667
        %v670 = vsel %vm287, %v669, 0.0
        %671 = vadd.xlane.f32.xlu0 %v670
        %v672 = vpop.xlane.xlu0 %671
        %v673 = vrcp.pop 32.0
        %v674 = vmul.f32 32.0, %v673
        %v675 = vsub.f32 1.0, %v674
        %v676 = vmul.f32 %v673, %v675
        %v677 = vadd.f32 %v673, %v676
        %vm678 = vweird.f32 %v673
        %v679 = vsel %vm678, %v673, %v677
        %v680 = vmul.f32 %v672, %v679
        %v681 = vsub.f32 %v669, %v680
        %v682 = vmul.f32 %v681, %v681
        %v683 = vsel %vm287, %v682, 0.0
        %684 = vadd.xlane.f32.xlu0 %v683
        %v685 = vpop.xlane.xlu0 %684
        %v686 = vmul.f32 %v685, %v679
        %v687 = vadd.f32 %v686, 1e-05
        %v688 = vrsqrt.pop %v687
        %v689 = vmul.f32 %v688, %v687
        %v690 = vmul.f32 %v689, %v688
        %v691 = vmul.f32 0.5, %v690
        %v692 = vsub.f32 1.5, %v691
        %v693 = vmul.f32 %v688, %v692
        %vm694 = vweird.f32 %v687
        %vm695 = vweird.f32 %v688
        %vm696 = vmor %vm694, %vm695
        %v697 = vsel %vm696, %v688, %v693
        %v698 = vmul.f32 %v681, %v697
        %v699 = vperm.slane %v285, 1
        %v700 = vmul.f32 %v698, %v699
        %v701 = vperm.slane %v285, 2
        %v702 = vadd.f32 %v700, %v701
        %s703 = scalar_lea.vmem [#allocation6], 32
        %v704 = vld [vmem:[%s703] sm:$0xff]
        %v705 = vld [vmem:[%s703 + $0x8] sm:$0xff]
        %v706 = vld [vmem:[%s703 + $0x10] sm:$0xff]
        %v707 = vld [vmem:[%s703 + $0x18] sm:$0xff]
        %s708 = scalar_lea.vmem [#allocation8], 32
        %v709 = vld [vmem:[%s708] sm:$0xff]
        %v710 = vld [vmem:[%s708 + $0x8] sm:$0xff]
        %v711 = vld [vmem:[%s708 + $0x10] sm:$0xff]
        %v712 = vld [vmem:[%s708 + $0x18] sm:$0xff]
        %v713 = vld [vmem:[%s3 + $0x1] sm:$0x1]
        %s714 = scalar_lea.vmem %s4, 4
        %v715 = vld [vmem:[%s714] sm:$0x7]
        %v716 = vperm.slane %v713, 0
        %v718 = vsel %vm287, %v702, 0
        %720 = vmatpush.msra.mxu0 0.0
        %721 = vmatpush.msra.mxu0 0.0
        %722 = vmatpush.msra.mxu0 0.0
        %723 = vmatpush.msra.mxu0 0.0
        %724 = vmatpush.msra.mxu0 0.0
        %725 = vmatpush.msra.mxu0 0.0
        %726 = vmatpush.msra.mxu0 0.0
        %727 = vmatpush.msra.mxu0 0.0
        %728 = vmatpush.msra.mxu0 0.0
        %729 = vmatpush.msra.mxu0 0.0
        %730 = vmatpush.msra.mxu0 0.0
        %731 = vmatpush.msra.mxu0 0.0
        %732 = vmatpush.msra.mxu0 %v707
        %733 = vmatpush.msra.mxu0 %v706
        %734 = vmatpush.msra.mxu0 %v705
        %735 = vmatpush.msra.mxu0 %v704
        %736 = vmatmul.f32.gmra.mxu0 %v718
        %v737 = vpop.f32.mrf.mxu0
        %v738 = vadd.f32 %v716, %v737
        %739 = vdwg.mxu0
        %v740 = vmul.f32 %v738, 0.35355338
        %742 = vrot.lane.b32.xlu0 %v738, 96
        %v743 = vpop.permute.xlu0 %742
        %v745 = vsel %vm315, %v740, 0
        %v747 = vsel %vm315, %v743, 0
        %749 = vmatpush.xpose.msra.mxu0 0.0
        %750 = vmatpush.xpose.msra.mxu0 0.0
        %751 = vmatpush.xpose.msra.mxu0 0.0
        %752 = vmatpush.xpose.msra.mxu0 0.0
        %753 = vmatpush.xpose.msra.mxu0 0.0
        %754 = vmatpush.xpose.msra.mxu0 0.0
        %755 = vmatpush.xpose.msra.mxu0 0.0
        %756 = vmatpush.xpose.msra.mxu0 0.0
        %757 = vmatpush.xpose.msra.mxu0 0.0
        %758 = vmatpush.xpose.msra.mxu0 0.0
        %759 = vmatpush.xpose.msra.mxu0 0.0
        %760 = vmatpush.xpose.msra.mxu0 0.0
        %761 = vmatpush.xpose.msra.mxu0 0.0
        %762 = vmatpush.xpose.msra.mxu0 0.0
        %763 = vmatpush.xpose.msra.mxu0 0.0
        %764 = vmatpush.xpose.msra.mxu0 %v747
        %765 = vmatmul.f32.gmra.mxu0 %v745
        %v766 = vpop.f32.mrf.mxu0
        %v767 = vadd.f32 0.0, %v766
        %768 = vdwg.mxu0
        %v769 = vsel %vm315, %v767, -inf
        %770 = vmax.xlane.f32.xlu0 %v769
        %v771 = vpop.xlane.xlu0 %770
        %v772 = vsub.f32 %v767, %v771
        %v773 = vmul.f32 %v772, 1.442695
        %v774 = vpow.pop %v773
        %v775 = vsel %vm315, %v774, 0.0
        %776 = vadd.xlane.f32.xlu0 %v775
        %v777 = vpop.xlane.xlu0 %776
        %v778 = vrcp.pop %v777
        %v779 = vmul.f32 %v777, %v778
        %v780 = vsub.f32 1.0, %v779
        %v781 = vmul.f32 %v778, %v780
        %v782 = vadd.f32 %v778, %v781
        %vm783 = vweird.f32 %v777
        %vm784 = vweird.f32 %v778
        %vm785 = vmor %vm783, %vm784
        %v786 = vsel %vm785, %v778, %v782
        %v787 = vand.u32 2147483647, %v777
        %vm788 = vcmp.eq.f32.partialorder %v787, 8.507059e+37
        %v789 = vand.u32 %v777, 2147483648
        %v790 = vor.u32 1.1754944e-38, %v789
        %v791 = vsel %vm788, %v790, %v786
        %v792 = vmul.f32 %v774, %v791
        %793 = vrot.lane.b32.xlu0 %v738, 64
        %v794 = vpop.permute.xlu0 %793
        %v797 = vsel %vm315, %v792, 0
        %799 = vmatpush.msra.mxu0 0.0
        %800 = vmatpush.msra.mxu0 0.0
        %801 = vmatpush.msra.mxu0 0.0
        %802 = vmatpush.msra.mxu0 0.0
        %803 = vmatpush.msra.mxu0 0.0
        %804 = vmatpush.msra.mxu0 0.0
        %805 = vmatpush.msra.mxu0 0.0
        %806 = vmatpush.msra.mxu0 0.0
        %807 = vmatpush.msra.mxu0 0.0
        %808 = vmatpush.msra.mxu0 0.0
        %809 = vmatpush.msra.mxu0 0.0
        %810 = vmatpush.msra.mxu0 0.0
        %811 = vmatpush.msra.mxu0 0.0
        %812 = vmatpush.msra.mxu0 0.0
        %813 = vmatpush.msra.mxu0 0.0
        %814 = vmatpush.msra.mxu0 %v794
        %815 = vmatmul.f32.gmra.mxu0 %v797
        %v816 = vpop.f32.mrf.mxu0
        %v817 = vadd.f32 0.0, %v816
        %818 = vdwg.mxu0
        %819 = vst.msk [vmem:[#allocation2] sm:$0xff] %vm315, %v817
        %820 = vrot.lane.b32.xlu0 %v740, 120
        %v821 = vpop.permute.xlu0 %820
        %822 = vrot.lane.b32.xlu0 %v738, 88
        %v823 = vpop.permute.xlu0 %822
        %v824 = vsel %vm315, %v821, 0
        %v826 = vsel %vm315, %v823, 0
        %828 = vmatpush.xpose.msra.mxu0 0.0
        %829 = vmatpush.xpose.msra.mxu0 0.0
        %830 = vmatpush.xpose.msra.mxu0 0.0
        %831 = vmatpush.xpose.msra.mxu0 0.0
        %832 = vmatpush.xpose.msra.mxu0 0.0
        %833 = vmatpush.xpose.msra.mxu0 0.0
        %834 = vmatpush.xpose.msra.mxu0 0.0
        %835 = vmatpush.xpose.msra.mxu0 0.0
        %836 = vmatpush.xpose.msra.mxu0 0.0
        %837 = vmatpush.xpose.msra.mxu0 0.0
        %838 = vmatpush.xpose.msra.mxu0 0.0
        %839 = vmatpush.xpose.msra.mxu0 0.0
        %840 = vmatpush.xpose.msra.mxu0 0.0
        %841 = vmatpush.xpose.msra.mxu0 0.0
        %842 = vmatpush.xpose.msra.mxu0 0.0
        %843 = vmatpush.xpose.msra.mxu0 %v826
        %844 = vmatmul.f32.gmra.mxu0 %v824
        %v845 = vpop.f32.mrf.mxu0
        %v846 = vadd.f32 0.0, %v845
        %847 = vdwg.mxu0
        %v848 = vsel %vm315, %v846, -inf
        %849 = vmax.xlane.f32.xlu0 %v848
        %v850 = vpop.xlane.xlu0 %849
        %v851 = vsub.f32 %v846, %v850
        %v852 = vmul.f32 %v851, 1.442695
        %v853 = vpow.pop %v852
        %v854 = vsel %vm315, %v853, 0.0
        %855 = vadd.xlane.f32.xlu0 %v854
        %v856 = vpop.xlane.xlu0 %855
        %v857 = vrcp.pop %v856
        %v858 = vmul.f32 %v856, %v857
        %v859 = vsub.f32 1.0, %v858
        %v860 = vmul.f32 %v857, %v859
        %v861 = vadd.f32 %v857, %v860
        %vm862 = vweird.f32 %v856
        %vm863 = vweird.f32 %v857
        %vm864 = vmor %vm862, %vm863
        %v865 = vsel %vm864, %v857, %v861
        %v866 = vand.u32 2147483647, %v856
        %vm867 = vcmp.eq.f32.partialorder %v866, 8.507059e+37
        %v868 = vand.u32 %v856, 2147483648
        %v869 = vor.u32 1.1754944e-38, %v868
        %v870 = vsel %vm867, %v869, %v865
        %v871 = vmul.f32 %v853, %v870
        %872 = vrot.lane.b32.xlu0 %v738, 56
        %v873 = vpop.permute.xlu0 %872
        %v876 = vsel %vm315, %v871, 0
        %878 = vmatpush.msra.mxu0 0.0
        %879 = vmatpush.msra.mxu0 0.0
        %880 = vmatpush.msra.mxu0 0.0
        %881 = vmatpush.msra.mxu0 0.0
        %882 = vmatpush.msra.mxu0 0.0
        %883 = vmatpush.msra.mxu0 0.0
        %884 = vmatpush.msra.mxu0 0.0
        %885 = vmatpush.msra.mxu0 0.0
        %886 = vmatpush.msra.mxu0 0.0
        %887 = vmatpush.msra.mxu0 0.0
        %888 = vmatpush.msra.mxu0 0.0
        %889 = vmatpush.msra.mxu0 0.0
        %890 = vmatpush.msra.mxu0 0.0
        %891 = vmatpush.msra.mxu0 0.0
        %892 = vmatpush.msra.mxu0 0.0
        %893 = vmatpush.msra.mxu0 %v873
        %894 = vmatmul.f32.gmra.mxu0 %v876
        %v895 = vpop.f32.mrf.mxu0
        %v896 = vadd.f32 0.0, %v895
        %897 = vdwg.mxu0
        %899 = vrot.lane.b32.xlu0 %v896, 8
        %v900 = vpop.permute.xlu0 %899
        %902 = vst.msk [vmem:[#allocation2] sm:$0xff] %vm474, %v900
        %903 = vrot.lane.b32.xlu0 %v740, 112
        %v904 = vpop.permute.xlu0 %903
        %905 = vrot.lane.b32.xlu0 %v738, 80
        %v906 = vpop.permute.xlu0 %905
        %v907 = vsel %vm315, %v904, 0
        %v909 = vsel %vm315, %v906, 0
        %911 = vmatpush.xpose.msra.mxu0 0.0
        %912 = vmatpush.xpose.msra.mxu0 0.0
        %913 = vmatpush.xpose.msra.mxu0 0.0
        %914 = vmatpush.xpose.msra.mxu0 0.0
        %915 = vmatpush.xpose.msra.mxu0 0.0
        %916 = vmatpush.xpose.msra.mxu0 0.0
        %917 = vmatpush.xpose.msra.mxu0 0.0
        %918 = vmatpush.xpose.msra.mxu0 0.0
        %919 = vmatpush.xpose.msra.mxu0 0.0
        %920 = vmatpush.xpose.msra.mxu0 0.0
        %921 = vmatpush.xpose.msra.mxu0 0.0
        %922 = vmatpush.xpose.msra.mxu0 0.0
        %923 = vmatpush.xpose.msra.mxu0 0.0
        %924 = vmatpush.xpose.msra.mxu0 0.0
        %925 = vmatpush.xpose.msra.mxu0 0.0
        %926 = vmatpush.xpose.msra.mxu0 %v909
        %927 = vmatmul.f32.gmra.mxu0 %v907
        %v928 = vpop.f32.mrf.mxu0
        %v929 = vadd.f32 0.0, %v928
        %930 = vdwg.mxu0
        %v931 = vsel %vm315, %v929, -inf
        %932 = vmax.xlane.f32.xlu0 %v931
        %v933 = vpop.xlane.xlu0 %932
        %v934 = vsub.f32 %v929, %v933
        %v935 = vmul.f32 %v934, 1.442695
        %v936 = vpow.pop %v935
        %v937 = vsel %vm315, %v936, 0.0
        %938 = vadd.xlane.f32.xlu0 %v937
        %v939 = vpop.xlane.xlu0 %938
        %v940 = vrcp.pop %v939
        %v941 = vmul.f32 %v939, %v940
        %v942 = vsub.f32 1.0, %v941
        %v943 = vmul.f32 %v940, %v942
        %v944 = vadd.f32 %v940, %v943
        %vm945 = vweird.f32 %v939
        %vm946 = vweird.f32 %v940
        %vm947 = vmor %vm945, %vm946
        %v948 = vsel %vm947, %v940, %v944
        %v949 = vand.u32 2147483647, %v939
        %vm950 = vcmp.eq.f32.partialorder %v949, 8.507059e+37
        %v951 = vand.u32 %v939, 2147483648
        %v952 = vor.u32 1.1754944e-38, %v951
        %v953 = vsel %vm950, %v952, %v948
        %v954 = vmul.f32 %v936, %v953
        %955 = vrot.lane.b32.xlu0 %v738, 48
        %v956 = vpop.permute.xlu0 %955
        %v959 = vsel %vm315, %v954, 0
        %961 = vmatpush.msra.mxu0 0.0
        %962 = vmatpush.msra.mxu0 0.0
        %963 = vmatpush.msra.mxu0 0.0
        %964 = vmatpush.msra.mxu0 0.0
        %965 = vmatpush.msra.mxu0 0.0
        %966 = vmatpush.msra.mxu0 0.0
        %967 = vmatpush.msra.mxu0 0.0
        %968 = vmatpush.msra.mxu0 0.0
        %969 = vmatpush.msra.mxu0 0.0
        %970 = vmatpush.msra.mxu0 0.0
        %971 = vmatpush.msra.mxu0 0.0
        %972 = vmatpush.msra.mxu0 0.0
        %973 = vmatpush.msra.mxu0 0.0
        %974 = vmatpush.msra.mxu0 0.0
        %975 = vmatpush.msra.mxu0 0.0
        %976 = vmatpush.msra.mxu0 %v956
        %977 = vmatmul.f32.gmra.mxu0 %v959
        %v978 = vpop.f32.mrf.mxu0
        %v979 = vadd.f32 0.0, %v978
        %980 = vdwg.mxu0
        %982 = vrot.lane.b32.xlu0 %v979, 16
        %v983 = vpop.permute.xlu0 %982
        %985 = vst.msk [vmem:[#allocation2] sm:$0xff] %vm558, %v983
        %986 = vrot.lane.b32.xlu0 %v740, 104
        %v987 = vpop.permute.xlu0 %986
        %988 = vrot.lane.b32.xlu0 %v738, 72
        %v989 = vpop.permute.xlu0 %988
        %v990 = vsel %vm315, %v987, 0
        %v992 = vsel %vm315, %v989, 0
        %994 = vmatpush.xpose.msra.mxu0 0.0
        %995 = vmatpush.xpose.msra.mxu0 0.0
        %996 = vmatpush.xpose.msra.mxu0 0.0
        %997 = vmatpush.xpose.msra.mxu0 0.0
        %998 = vmatpush.xpose.msra.mxu0 0.0
        %999 = vmatpush.xpose.msra.mxu0 0.0
        %1000 = vmatpush.xpose.msra.mxu0 0.0
        %1001 = vmatpush.xpose.msra.mxu0 0.0
        %1002 = vmatpush.xpose.msra.mxu0 0.0
        %1003 = vmatpush.xpose.msra.mxu0 0.0
        %1004 = vmatpush.xpose.msra.mxu0 0.0
        %1005 = vmatpush.xpose.msra.mxu0 0.0
        %1006 = vmatpush.xpose.msra.mxu0 0.0
        %1007 = vmatpush.xpose.msra.mxu0 0.0
        %1008 = vmatpush.xpose.msra.mxu0 0.0
        %1009 = vmatpush.xpose.msra.mxu0 %v992
        %1010 = vmatmul.f32.gmra.mxu0 %v990
        %v1011 = vpop.f32.mrf.mxu0
        %v1012 = vadd.f32 0.0, %v1011
        %1013 = vdwg.mxu0
        %v1014 = vsel %vm315, %v1012, -inf
        %1015 = vmax.xlane.f32.xlu0 %v1014
        %v1016 = vpop.xlane.xlu0 %1015
        %v1017 = vsub.f32 %v1012, %v1016
        %v1018 = vmul.f32 %v1017, 1.442695
        %v1019 = vpow.pop %v1018
        %v1020 = vsel %vm315, %v1019, 0.0
        %1021 = vadd.xlane.f32.xlu0 %v1020
        %v1022 = vpop.xlane.xlu0 %1021
        %v1023 = vrcp.pop %v1022
        %v1024 = vmul.f32 %v1022, %v1023
        %v1025 = vsub.f32 1.0, %v1024
        %v1026 = vmul.f32 %v1023, %v1025
        %v1027 = vadd.f32 %v1023, %v1026
        %vm1028 = vweird.f32 %v1022
        %vm1029 = vweird.f32 %v1023
        %vm1030 = vmor %vm1028, %vm1029
        %v1031 = vsel %vm1030, %v1023, %v1027
        %v1032 = vand.u32 2147483647, %v1022
        %vm1033 = vcmp.eq.f32.partialorder %v1032, 8.507059e+37
        %v1034 = vand.u32 %v1022, 2147483648
        %v1035 = vor.u32 1.1754944e-38, %v1034
        %v1036 = vsel %vm1033, %v1035, %v1031
        %v1037 = vmul.f32 %v1019, %v1036
        %1038 = vrot.lane.b32.xlu0 %v738, 40
        %v1039 = vpop.permute.xlu0 %1038
        %v1042 = vsel %vm315, %v1037, 0
        %1044 = vmatpush.msra.mxu0 0.0
        %1045 = vmatpush.msra.mxu0 0.0
        %1046 = vmatpush.msra.mxu0 0.0
        %1047 = vmatpush.msra.mxu0 0.0
        %1048 = vmatpush.msra.mxu0 0.0
        %1049 = vmatpush.msra.mxu0 0.0
        %1050 = vmatpush.msra.mxu0 0.0
        %1051 = vmatpush.msra.mxu0 0.0
        %1052 = vmatpush.msra.mxu0 0.0
        %1053 = vmatpush.msra.mxu0 0.0
        %1054 = vmatpush.msra.mxu0 0.0
        %1055 = vmatpush.msra.mxu0 0.0
        %1056 = vmatpush.msra.mxu0 0.0
        %1057 = vmatpush.msra.mxu0 0.0
        %1058 = vmatpush.msra.mxu0 0.0
        %1059 = vmatpush.msra.mxu0 %v1039
        %1060 = vmatmul.f32.gmra.mxu0 %v1042
        %v1061 = vpop.f32.mrf.mxu0
        %v1062 = vadd.f32 0.0, %v1061
        %1063 = vdwg.mxu0
        %1065 = vrot.lane.b32.xlu0 %v1062, 24
        %v1066 = vpop.permute.xlu0 %1065
        %1068 = vst.msk [vmem:[#allocation2] sm:$0xff] %vm642, %v1066
        %v1069 = vld [vmem:[#allocation2] sm:$0xff]
        %v1070 = vperm.slane %v715, 0
        %v1072 = vsel %vm287, %v1069, 0
        %1074 = vmatpush.msra.mxu0 0.0
        %1075 = vmatpush.msra.mxu0 0.0
        %1076 = vmatpush.msra.mxu0 0.0
        %1077 = vmatpush.msra.mxu0 0.0
        %1078 = vmatpush.msra.mxu0 0.0
        %1079 = vmatpush.msra.mxu0 0.0
        %1080 = vmatpush.msra.mxu0 0.0
        %1081 = vmatpush.msra.mxu0 0.0
        %1082 = vmatpush.msra.mxu0 0.0
        %1083 = vmatpush.msra.mxu0 0.0
        %1084 = vmatpush.msra.mxu0 0.0
        %1085 = vmatpush.msra.mxu0 0.0
        %1086 = vmatpush.msra.mxu0 %v712
        %1087 = vmatpush.msra.mxu0 %v711
        %1088 = vmatpush.msra.mxu0 %v710
        %1089 = vmatpush.msra.mxu0 %v709
        %1090 = vmatmul.f32.gmra.mxu0 %v1072
        %v1091 = vpop.f32.mrf.mxu0
        %v1092 = vadd.f32 %v1070, %v1091
        %1093 = vdwg.mxu0
        %v1094 = vadd.f32 %v702, %v1092
        %v1095 = vsel %vm287, %v1094, 0.0
        %1096 = vadd.xlane.f32.xlu0 %v1095
        %v1097 = vpop.xlane.xlu0 %1096
        %v1098 = vmul.f32 %v1097, %v679
        %v1099 = vsub.f32 %v1094, %v1098
        %v1100 = vmul.f32 %v1099, %v1099
        %v1101 = vsel %vm287, %v1100, 0.0
        %1102 = vadd.xlane.f32.xlu0 %v1101
        %v1103 = vpop.xlane.xlu0 %1102
        %v1104 = vmul.f32 %v1103, %v679
        %v1105 = vadd.f32 %v1104, 1e-05
        %v1106 = vrsqrt.pop %v1105
        %v1107 = vmul.f32 %v1106, %v1105
        %v1108 = vmul.f32 %v1107, %v1106
        %v1109 = vmul.f32 0.5, %v1108
        %v1110 = vsub.f32 1.5, %v1109
        %v1111 = vmul.f32 %v1106, %v1110
        %vm1112 = vweird.f32 %v1105
        %vm1113 = vweird.f32 %v1106
        %vm1114 = vmor %vm1112, %vm1113
        %v1115 = vsel %vm1114, %v1106, %v1111
        %v1116 = vmul.f32 %v1099, %v1115
        %v1117 = vperm.slane %v715, 1
        %v1118 = vmul.f32 %v1116, %v1117
        %v1119 = vperm.slane %v715, 2
        %v1120 = vadd.f32 %v1118, %v1119
        %1121 = vst.msk [vmem:[%s274] sm:$0xff] %vm287, %v1120
        %s1122 = sand.u32 %s141, 1
        %s1123 = scalar_lea.sflag [#allocation5], %s1122
        %s1124 = sand.u32 %s141, 1
        %s1125 = smul.addr %s1124, 8
        %s1126 = scalar_lea.vmem [#allocation9], %s1125
        // Predicated region
        $region53: #{tpu_custom_call.1} parent=39 // pred_check
          %p1127 = pneg %p151
        $region54: #{tpu_custom_call.1} parent=39 // pred_check_branch
          %1129 = sbr.rel (%p1127) target = $region56
        $region55: #{tpu_custom_call.1} parent=39 // pred_region
          %1131 = vsyncadd %s1123, 0
          %s1132 = smul.addr %s23, 8
          %s1133 = scalar_lea.hbm %s5, %s1132
          %s1135 = sshll.u32 %s1126, 4
          %s1136 = int_to_ptr.vmem [resolvable:$true] %s1135
          %s1137 = sshll.u32 %s1133, 4
          %s1138 = int_to_ptr.hbm [resolvable:$true] %s1137
          %1140 = dma.vmem_to_hbm [thread:$0]  %s1136, 128, %s1138, %s1123
        $region56: #{tpu_custom_call.1} parent=39 // pred_fallthru
          _
      $region40: #{tpu_custom_call.1} parent=5 // pred_fallthru
        _
      %p1141 = scmp.le.s32.totalorder 2, %s18
      // Predicated region
      $region57: #{tpu_custom_call.1} parent=5 // pred_check
        %p1142 = pneg %p1141
      $region58: #{tpu_custom_call.1} parent=5 // pred_check_branch
        %1144 = sbr.rel (%p1142) target = $region60
      $region59: #{tpu_custom_call.1} parent=5 // pred_region
        %s1145 = ssub.s32 %s18, 2
        // Predicated region
        $region61: #{tpu_custom_call.1} parent=59 // pred_check
          %p1146 = pneg %p157
        $region62: #{tpu_custom_call.1} parent=59 // pred_check_branch
          %1148 = sbr.rel (%p1146) target = $region64
        $region63: #{tpu_custom_call.1} parent=59 // pred_region
          %s1149 = sand.u32 %s142, 1
          %s1150 = scalar_lea.sflag [#allocation5], %s1149
          %s1151 = sand.u32 %s142, 1
          %s1152 = smul.addr %s1151, 8
          %s1153 = scalar_lea.vmem [#allocation9], %s1152
          %1155 = dma.done %s1150, 128
        $region64: #{tpu_custom_call.1} parent=59 // pred_fallthru
          _
      $region60: #{tpu_custom_call.1} parent=5 // pred_fallthru
        _
    $region6: #{tpu_custom_call.1} parent=1 // loop_footer
      %s22 = sadd.s32 1, %s18
    $region7: #{tpu_custom_call.1} parent=1 // loop_footer_branch
      %17 = sbr.rel target = $region3
    $region8: #{tpu_custom_call.1} parent=1 // loop_exit
      _
    %1156 = vsyncpa [#allocation4], 1
    %s1157 = scalar_lea.sflag [#allocation4], 1
    %1158 = vsyncpa %s1157, 1
    %1159 = vsyncpa [#allocation7], 1
    %1160 = vsyncpa [#allocation5], 1
    %s1161 = scalar_lea.sflag [#allocation5], 1
    %1162 = vsyncpa %s1161, 1

</llo_original>
